<compile_context>
chip_gen: v5e
topology: v5e:2x2
jax: 0.10.0
libtpu: 0.0.40
codegen_flags: <defaults>
</compile_context>

<pallas_src>
import functools
import math

import jax
import jax.numpy as jnp
from jax.experimental import pallas as pl
from jax.experimental.pallas import tpu as pltpu


def _encoder_layer_kernel(q_ref, kh_ref, vh_ref, bias_ref,
                          wq_ref, wo_ref, gamma_ref, beta_ref,
                          out_ref, *, eps):
    """One (batch element, query tile) step of the pre-LN MHSA encoder layer.

    Block shapes seen by the kernel:
      q_ref:      (TQ, D)      raw queries (also the residual source)
      kh_ref:     (H, S, d_k)  pre-projected keys, head-major, compute dtype
      vh_ref:     (H, S, d_k)  pre-projected values
      bias_ref:   (1, S)       additive mask bias (0 or -1e30), f32
      wq_ref:     (H, D, d_k)  per-head Q weights, 1/sqrt(d_k) pre-folded
      wo_ref:     (H, d_k, D)  per-head output-projection weights
      gamma/beta: (1, D)       LayerNorm affine
      out_ref:    (TQ, D)
    """
    f32 = jnp.float32
    cdt = kh_ref.dtype                       # MXU compute dtype (input dtype)

    q = q_ref[...]                           # (TQ, D)
    TQ, D = q.shape
    H, S, d_k = kh_ref.shape

    # ---- LayerNorm (torch-style: unbiased std, eps added to the std) ----
    qf = q.astype(f32)
    mean = jnp.mean(qf, axis=-1, keepdims=True)
    diff = qf - mean
    var = jnp.sum(diff * diff, axis=-1, keepdims=True) * f32(1.0 / (D - 1))
    # eps is added to std (not var), so rsqrt(var + eps) would change semantics;
    # keep the exact reciprocal here (one (TQ, 1) vector, negligible cost).
    inv_std = pl.reciprocal(jnp.sqrt(var) + f32(eps), approx=False)
    qn = gamma_ref[...].astype(f32) * (diff * inv_std) + beta_ref[...].astype(f32)

    # ---- batched per-head Q projection: (H,TQ,D) x (H,D,d_k) -> (H,TQ,d_k) ----
    # Same total MACs as the full-width (TQ,D)x(D,D) matmul; the head-major result
    # feeds the batched attention matmuls without any in-kernel reshape/transpose.
    qn_b = jnp.broadcast_to(qn.astype(cdt)[None], (H, TQ, D))
    qh = jnp.einsum("hqe,hed->hqd", qn_b, wq_ref[...],
                    preferred_element_type=f32).astype(cdt)        # cast once

    kh = kh_ref[...]                          # already compute dtype
    vh = vh_ref[...]

    # ---- attention: all heads in one batched dot_general per stage ----
    scores = jnp.einsum("hqd,hkd->hqk", qh, kh,
                        preferred_element_type=f32)                 # (H, TQ, S)
    scores = scores + bias_ref[...][None]                           # (1,1,S) bias

    smax = jnp.max(scores, axis=-1, keepdims=True)
    p = jnp.exp(scores - smax)
    # approx reciprocal -> EUP slot (free relative to the MXU/VPU work here).
    inv_denom = pl.reciprocal(jnp.sum(p, axis=-1, keepdims=True), approx=True)

    pv = jnp.einsum("hqk,hkd->hqd", p.astype(cdt), vh,
                    preferred_element_type=f32)                     # (H, TQ, d_k)
    ctx = (pv * inv_denom).astype(cdt)        # normalize AFTER P@V (TQ*d_k muls)

    # ---- output projection accumulated over heads + residual ----
    attn = jnp.einsum("hqd,hdo->hqo", ctx, wo_ref[...],
                      preferred_element_type=f32)                   # (H, TQ, D)
    attn_out = jnp.sum(attn, axis=0)                                # (TQ, D)

    # dropout is identity in eval mode.
    out_ref[...] = (attn_out + qf).astype(out_ref.dtype)


def prepare_params(raw, *, n_heads):
    """One-time parameter prep: fold 1/sqrt(d_k) into wq, build head-major weights.

    Raw weights are (in, out), i.e. y = x @ w (transpose of torch nn.Linear.weight).
    """
    D = raw["wq"].shape[0]
    assert D % n_heads == 0
    d_k = D // n_heads
    wq_scaled = raw["wq"] * (1.0 / math.sqrt(d_k))
    return {
        # (D, D) -> (H, D, d_k): head h owns output columns [h*d_k, (h+1)*d_k)
        "wq_heads": wq_scaled.reshape(D, n_heads, d_k).transpose(1, 0, 2),
        # (D, D) -> (H, d_k, D): head h owns input rows [h*d_k, (h+1)*d_k)
        "wo_heads": raw["wo"].reshape(n_heads, d_k, D),
        "wk": raw["wk"],
        "wv": raw["wv"],
        "gamma": raw["gamma"],
        "beta": raw["beta"],
    }


def _pick_q_tile(seq_len, n_heads):
    # Largest sublane-friendly divisor of S whose f32 (H, TQ, S) score block stays
    # comfortably inside VMEM on every TPU generation.
    for t in (1024, 512, 256, 128, 64, 32, 16, 8):
        if seq_len % t == 0 and n_heads * t * seq_len * 4 <= (16 << 20):
            return t
    return seq_len


def encoder_layer(q, k, v, mask, params, *, n_heads, eps=1e-6, q_tile=None):
    """q, k, v: (B, S, D); mask: (B, 1, S) float (0 = masked out).

    `params` must come from prepare_params().
    """
    B, S, D = q.shape
    assert D % n_heads == 0
    d_k = D // n_heads
    cdt = q.dtype
    hp = jax.lax.Precision.HIGHEST

    # --- hoisted once-per-call prep (was recomputed for every q-tile before) ---
    # K/V projections + head-major split, done by XLA and consumed by every q tile.
    kp = jnp.einsum("bse,ed->bsd", k, params["wk"], precision=hp).astype(cdt)
    vp = jnp.einsum("bse,ed->bsd", v, params["wv"], precision=hp).astype(cdt)
    kph = kp.reshape(B, S, n_heads, d_k).transpose(0, 2, 1, 3)    # (B, H, S, d_k)
    vph = vp.reshape(B, S, n_heads, d_k).transpose(0, 2, 1, 3)
    # Additive mask bias; large finite negative avoids inf-inf NaNs.
    bias = jnp.where(mask == 0, -1e30, 0.0).astype(jnp.float32)   # (B, 1, S)

    tq = q_tile if q_tile is not None else _pick_q_tile(S, n_heads)
    assert S % tq == 0 and (tq == S or tq % 8 == 0), "q tile must divide S (x8)"
    n_q_blocks = S // tq

    kernel = functools.partial(_encoder_layer_kernel, eps=eps)

    q_spec = pl.BlockSpec((None, tq, D), lambda b, qi: (b, qi, 0))
    kv_spec = pl.BlockSpec((None, n_heads, S, d_k), lambda b, qi: (b, 0, 0, 0))
    bias_spec = pl.BlockSpec((None, 1, S), lambda b, qi: (b, 0, 0))
    # Constant index maps -> never re-DMAed across grid steps.
    # TODO(synk): pipeline_mode=pl.Buffered(1) on these (where supported) would also
    # drop their second pipeline buffer and reclaim ~2*D*D*itemsize of VMEM.
    wq_spec = pl.BlockSpec((n_heads, D, d_k), lambda b, qi: (0, 0, 0))
    wo_spec = pl.BlockSpec((n_heads, d_k, D), lambda b, qi: (0, 0, 0))
    vec_spec = pl.BlockSpec((1, D), lambda b, qi: (0, 0))

    # --- VMEM budget (no double counting), clamped below this generation's VMEM ---
    isz = jnp.dtype(cdt).itemsize
    block_bytes = 2 * isz * (2 * tq * D            # q in + out (double-buffered)
                             + 2 * S * D           # kph + vph blocks
                             + 2 * D * D + 2 * D)  # wq_heads, wo_heads, gamma, beta
    block_bytes += 2 * 4 * S                       # bias block (f32)
    interm_bytes = 4 * (3 * tq * D                 # qf, qn, attn_out (f32)
                        + 2 * n_heads * tq * D     # broadcast qn + per-head out-proj
                        + 2 * n_heads * tq * S     # scores + p
                        + 2 * n_heads * tq * d_k)  # qh, ctx
    vmem_needed = block_bytes + interm_bytes + (8 << 20)  # Mosaic scratch headroom
    try:
        phys_vmem = int(pltpu.get_tpu_info().vmem_capacity_bytes)
    except Exception:
        phys_vmem = 64 << 20                                # conservative (v7x)
    vmem_limit = min(max(vmem_needed, 32 << 20), (phys_vmem * 7) // 8)

    # Megacore: shard the batch axis; q tiles stay on one core so K/V blocks and
    # weights are never DMA-duplicated across cores for the same batch element.
    qi_semantics = "parallel" if B == 1 else "arbitrary"

    # TODO(synk): for very long S on v7x (64 MiB VMEM), add a key-block grid axis with
    # flash-style online softmax instead of keeping full-S K/V blocks resident.
    return pl.pallas_call(
        kernel,
        out_shape=jax.ShapeDtypeStruct((B, S, D), q.dtype),
        grid_spec=pltpu.PrefetchScalarGridSpec(
            num_scalar_prefetch=0,
            grid=(B, n_q_blocks),
            in_specs=[
                q_spec,                    # q (query tile, residual source)
                kv_spec,                   # pre-projected keys   (head-major)
                kv_spec,                   # pre-projected values (head-major)
                bias_spec,                 # additive mask bias
                wq_spec, wo_spec,          # per-head wq (scaled), per-head wo
                vec_spec, vec_spec,        # gamma, beta
            ],
            out_specs=q_spec,
        ),
        compiler_params=pltpu.CompilerParams(
            dimension_semantics=("parallel", qi_semantics),
            vmem_limit_bytes=int(vmem_limit)),
    )(q, kph, vph, bias,
      params["wq_heads"], params["wo_heads"], params["gamma"], params["beta"])


def encoder_layer_ref(q, k, v, mask, raw_params, *, n_heads):
    """Pure-JAX reference mirroring the PyTorch forward (eval mode)."""
    B, S, D = q.shape
    d_k = D // n_heads
    hp = jax.lax.Precision.HIGHEST

    mean = jnp.mean(q, axis=-1, keepdims=True)
    diff = q - mean
    std = jnp.sqrt(jnp.sum(diff * diff, axis=-1, keepdims=True) / (D - 1))
    qn = raw_params["gamma"] * diff / (std + 1e-6) + raw_params["beta"]

    def split(x):
        return x.reshape(B, S, n_heads, d_k).transpose(0, 2, 1, 3)  # (B,H,S,dk)

    qp = split(jnp.einsum("bse,ed->bsd", qn, raw_params["wq"], precision=hp))
    kp = split(jnp.einsum("bse,ed->bsd", k, raw_params["wk"], precision=hp))
    vp = split(jnp.einsum("bse,ed->bsd", v, raw_params["wv"], precision=hp))
    scores = jnp.einsum("bhqd,bhkd->bhqk", qp, kp, precision=hp) / math.sqrt(d_k)
    scores = jnp.where(mask[:, None, :, :] == 0, -jnp.inf, scores)
    p = jax.nn.softmax(scores, axis=-1)
    ctx = jnp.einsum("bhqk,bhkd->bhqd", p, vp, precision=hp)
    ctx = ctx.transpose(0, 2, 1, 3).reshape(B, S, D)
    return jnp.einsum("bsd,do->bso", ctx, raw_params["wo"], precision=hp) + q


if __name__ == "__main__":
    B, S, D, H = 2, 16, 32, 8  # batch, seq, d_model, heads (d_k = 4)

    key = jax.random.PRNGKey(0)
    keys = jax.random.split(key, 7)

    q = jax.random.normal(keys[0], (B, S, D), dtype=jnp.float32)
    k = jax.random.normal(keys[1], (B, S, D), dtype=jnp.float32)
    v = jax.random.normal(keys[2], (B, S, D), dtype=jnp.float32)
    # mask: last two key positions masked out (0), broadcast over heads/queries.
    mask = (jnp.arange(S) < S - 2).astype(jnp.float32)
    mask = jnp.broadcast_to(mask[None, None, :], (B, 1, S))

    scale = 0.02
    raw_params = {
        "wq": scale * jax.random.normal(keys[3], (D, D), dtype=jnp.float32),
        "wk": scale * jax.random.normal(keys[4], (D, D), dtype=jnp.float32),
        "wv": scale * jax.random.normal(keys[5], (D, D), dtype=jnp.float32),
        "wo": scale * jax.random.normal(keys[6], (D, D), dtype=jnp.float32),
        "gamma": jnp.ones((1, D), dtype=jnp.float32),
        "beta": jnp.zeros((1, D), dtype=jnp.float32),
    }
    params = prepare_params(raw_params, n_heads=H)

    # q_tile=8 -> two query tiles per batch element, exercising the inner grid axis
    # and the constant-index K/V / weight reuse across q tiles.
    out = encoder_layer(q, k, v, mask, params, n_heads=H, q_tile=8)
    out = jax.block_until_ready(out)

    ref = encoder_layer_ref(q, k, v, mask, raw_params, n_heads=H)
    assert out.shape == (B, S, D)
    # Tolerance covers the approx (EUP) softmax reciprocal + MXU accumulation order.
    assert jnp.allclose(out, ref, rtol=1e-3, atol=1e-3), "mismatch vs JAX reference"

    print("KERNEL_OK")
</pallas_src>

<mosaic_0001>
module attributes {stable_mosaic.version = 11 : i64} {
  func.func @_encoder_layer_kernel(%arg0: i32, %arg1: i32, %arg2: memref<1x8x32xf32, #tpu.memory_space<vmem>>, %arg3: memref<1x8x16x4xf32, #tpu.memory_space<vmem>>, %arg4: memref<1x8x16x4xf32, #tpu.memory_space<vmem>>, %arg5: memref<1x1x16xf32, #tpu.memory_space<vmem>>, %arg6: memref<8x32x4xf32, #tpu.memory_space<vmem>>, %arg7: memref<8x4x32xf32, #tpu.memory_space<vmem>>, %arg8: memref<1x32xf32, #tpu.memory_space<vmem>>, %arg9: memref<1x32xf32, #tpu.memory_space<vmem>>, %arg10: memref<1x8x32xf32, #tpu.memory_space<vmem>>) attributes {dimension_semantics = [#tpu.dimension_semantics<parallel>, #tpu.dimension_semantics<arbitrary>], iteration_bounds = array<i64: 2, 2>, scalar_prefetch = 0 : i64, scratch_operands = 0 : i64, tpu.core_type = #tpu.core_type<tc>, window_params = [{transform_indices = @transform_0, window_bounds = array<i64: 1, 8, 32>}, {transform_indices = @transform_1, window_bounds = array<i64: 1, 8, 16, 4>}, {transform_indices = @transform_2, window_bounds = array<i64: 1, 8, 16, 4>}, {transform_indices = @transform_3, window_bounds = array<i64: 1, 1, 16>}, {pipeline_mode = #tpu.pipeline_mode<synchronous>, transform_indices = @transform_4, window_bounds = array<i64: 8, 32, 4>}, {pipeline_mode = #tpu.pipeline_mode<synchronous>, transform_indices = @transform_5, window_bounds = array<i64: 8, 4, 32>}, {pipeline_mode = #tpu.pipeline_mode<synchronous>, transform_indices = @transform_6, window_bounds = array<i64: 1, 32>}, {pipeline_mode = #tpu.pipeline_mode<synchronous>, transform_indices = @transform_7, window_bounds = array<i64: 1, 32>}, {transform_indices = @transform_8, window_bounds = array<i64: 1, 8, 32>}]} {
    %c0 = arith.constant 0 : index
    %c0_0 = arith.constant 0 : index
    %c0_1 = arith.constant 0 : index
    %0 = vector.load %arg2[%c0, %c0_0, %c0_1] : memref<1x8x32xf32, #tpu.memory_space<vmem>>, vector<1x8x32xf32>
    %1 = vector.shape_cast %0 : vector<1x8x32xf32> to vector<8x32xf32>
    %cst = arith.constant dense<0.000000e+00> : vector<8xf32>
    %2 = vector.multi_reduction <add>, %1, %cst [1] : vector<8x32xf32> to vector<8xf32>
    %3 = vector.shape_cast %2 : vector<8xf32> to vector<8x1xf32>
    %cst_2 = arith.constant 3.200000e+01 : f32
    %4 = vector.broadcast %cst_2 : f32 to vector<8x1xf32>
    %5 = arith.divf %3, %4 : vector<8x1xf32>
    %6 = vector.broadcast %5 : vector<8x1xf32> to vector<8x32xf32>
    %7 = arith.subf %1, %6 : vector<8x32xf32>
    %8 = arith.mulf %7, %7 : vector<8x32xf32>
    %cst_3 = arith.constant dense<0.000000e+00> : vector<8xf32>
    %9 = vector.multi_reduction <add>, %8, %cst_3 [1] : vector<8x32xf32> to vector<8xf32>
    %10 = vector.shape_cast %9 : vector<8xf32> to vector<8x1xf32>
    %cst_4 = arith.constant 0.0322580636 : f32
    %11 = vector.broadcast %cst_4 : f32 to vector<8x1xf32>
    %12 = arith.mulf %10, %11 : vector<8x1xf32>
    %13 = math.sqrt %12 : vector<8x1xf32>
    %cst_5 = arith.constant 9.99999997E-7 : f32
    %14 = vector.broadcast %cst_5 : f32 to vector<8x1xf32>
    %15 = arith.addf %13, %14 : vector<8x1xf32>
    %16 = tpu.reciprocal %15 : vector<8x1xf32> -> vector<8x1xf32>
    %c0_6 = arith.constant 0 : index
    %c0_7 = arith.constant 0 : index
    %17 = vector.load %arg8[%c0_6, %c0_7] : memref<1x32xf32, #tpu.memory_space<vmem>>, vector<1x32xf32>
    %18 = vector.broadcast %16 : vector<8x1xf32> to vector<8x32xf32>
    %19 = arith.mulf %7, %18 : vector<8x32xf32>
    %20 = vector.broadcast %17 : vector<1x32xf32> to vector<8x32xf32>
    %21 = arith.mulf %20, %19 : vector<8x32xf32>
    %c0_8 = arith.constant 0 : index
    %c0_9 = arith.constant 0 : index
    %22 = vector.load %arg9[%c0_8, %c0_9] : memref<1x32xf32, #tpu.memory_space<vmem>>, vector<1x32xf32>
    %23 = vector.broadcast %22 : vector<1x32xf32> to vector<8x32xf32>
    %24 = arith.addf %21, %23 : vector<8x32xf32>
    %25 = vector.shape_cast %24 : vector<8x32xf32> to vector<1x8x32xf32>
    %26 = vector.shape_cast %25 : vector<1x8x32xf32> to vector<1x8x32xf32>
    %27 = vector.broadcast %26 : vector<1x8x32xf32> to vector<8x8x32xf32>
    %c0_10 = arith.constant 0 : index
    %c0_11 = arith.constant 0 : index
    %c0_12 = arith.constant 0 : index
    %28 = vector.load %arg6[%c0_10, %c0_11, %c0_12] : memref<8x32x4xf32, #tpu.memory_space<vmem>>, vector<8x32x4xf32>
    "tpu.trace_start"() <{level = 10 : i32, message = "hqe,hed->hqd"}> : () -> ()
    %cst_13 = arith.constant dense<0.000000e+00> : vector<8x8x4xf32>
    %29 = tpu.matmul %27, %28, %cst_13 {dimension_numbers = #tpu.dot_dimension_numbers<[2], [1], [1], [2], [0, 0, 0, 1, 1, 2], [0], [0]>} : vector<8x8x32xf32>, vector<8x32x4xf32>, vector<8x8x4xf32> -> vector<8x8x4xf32>
    "tpu.trace_stop"() : () -> ()
    %c0_14 = arith.constant 0 : index
    %c0_15 = arith.constant 0 : index
    %c0_16 = arith.constant 0 : index
    %c0_17 = arith.constant 0 : index
    %30 = vector.load %arg3[%c0_14, %c0_15, %c0_16, %c0_17] : memref<1x8x16x4xf32, #tpu.memory_space<vmem>>, vector<1x8x16x4xf32>
    %31 = vector.shape_cast %30 : vector<1x8x16x4xf32> to vector<8x16x4xf32>
    %c0_18 = arith.constant 0 : index
    %c0_19 = arith.constant 0 : index
    %c0_20 = arith.constant 0 : index
    %c0_21 = arith.constant 0 : index
    %32 = vector.load %arg4[%c0_18, %c0_19, %c0_20, %c0_21] : memref<1x8x16x4xf32, #tpu.memory_space<vmem>>, vector<1x8x16x4xf32>
    %33 = vector.shape_cast %32 : vector<1x8x16x4xf32> to vector<8x16x4xf32>
    "tpu.trace_start"() <{level = 10 : i32, message = "hqd,hkd->hqk"}> : () -> ()
    %cst_22 = arith.constant dense<0.000000e+00> : vector<8x8x16xf32>
    %34 = tpu.matmul %29, %31, %cst_22 {dimension_numbers = #tpu.dot_dimension_numbers<[2], [2], [1], [1], [0, 0, 0, 1, 1, 1], [0], [0]>} : vector<8x8x4xf32>, vector<8x16x4xf32>, vector<8x8x16xf32> -> vector<8x8x16xf32>
    "tpu.trace_stop"() : () -> ()
    %c0_23 = arith.constant 0 : index
    %c0_24 = arith.constant 0 : index
    %c0_25 = arith.constant 0 : index
    %35 = vector.load %arg5[%c0_23, %c0_24, %c0_25] : memref<1x1x16xf32, #tpu.memory_space<vmem>>, vector<1x1x16xf32>
    %36 = vector.shape_cast %35 : vector<1x1x16xf32> to vector<1x16xf32>
    %37 = vector.shape_cast %36 : vector<1x16xf32> to vector<1x1x16xf32>
    %38 = vector.broadcast %37 : vector<1x1x16xf32> to vector<8x8x16xf32>
    %39 = arith.addf %34, %38 : vector<8x8x16xf32>
    %cst_26 = arith.constant dense<0xFF800000> : vector<8x8xf32>
    %40 = vector.multi_reduction <maximumf>, %39, %cst_26 [2] : vector<8x8x16xf32> to vector<8x8xf32>
    %41 = vector.shape_cast %40 : vector<8x8xf32> to vector<8x8x1xf32>
    %42 = vector.broadcast %41 : vector<8x8x1xf32> to vector<8x8x16xf32>
    %43 = arith.subf %39, %42 : vector<8x8x16xf32>
    %44 = math.exp %43 : vector<8x8x16xf32>
    %cst_27 = arith.constant dense<0.000000e+00> : vector<8x8xf32>
    %45 = vector.multi_reduction <add>, %44, %cst_27 [2] : vector<8x8x16xf32> to vector<8x8xf32>
    %46 = vector.shape_cast %45 : vector<8x8xf32> to vector<8x8x1xf32>
    %47 = tpu.reciprocal %46 {approx = true} : vector<8x8x1xf32> -> vector<8x8x1xf32>
    "tpu.trace_start"() <{level = 10 : i32, message = "hqk,hkd->hqd"}> : () -> ()
    %cst_28 = arith.constant dense<0.000000e+00> : vector<8x8x4xf32>
    %48 = tpu.matmul %44, %33, %cst_28 {dimension_numbers = #tpu.dot_dimension_numbers<[2], [1], [1], [2], [0, 0, 0, 1, 1, 2], [0], [0]>} : vector<8x8x16xf32>, vector<8x16x4xf32>, vector<8x8x4xf32> -> vector<8x8x4xf32>
    "tpu.trace_stop"() : () -> ()
    %49 = vector.broadcast %47 : vector<8x8x1xf32> to vector<8x8x4xf32>
    %50 = arith.mulf %48, %49 : vector<8x8x4xf32>
    %c0_29 = arith.constant 0 : index
    %c0_30 = arith.constant 0 : index
    %c0_31 = arith.constant 0 : index
    %51 = vector.load %arg7[%c0_29, %c0_30, %c0_31] : memref<8x4x32xf32, #tpu.memory_space<vmem>>, vector<8x4x32xf32>
    "tpu.trace_start"() <{level = 10 : i32, message = "hqd,hdo->hqo"}> : () -> ()
    %cst_32 = arith.constant dense<0.000000e+00> : vector<8x8x32xf32>
    %52 = tpu.matmul %50, %51, %cst_32 {dimension_numbers = #tpu.dot_dimension_numbers<[2], [1], [1], [2], [0, 0, 0, 1, 1, 2], [0], [0]>} : vector<8x8x4xf32>, vector<8x4x32xf32>, vector<8x8x32xf32> -> vector<8x8x32xf32>
    "tpu.trace_stop"() : () -> ()
    %cst_33 = arith.constant dense<0.000000e+00> : vector<8x32xf32>
    %53 = vector.multi_reduction <add>, %52, %cst_33 [0] : vector<8x8x32xf32> to vector<8x32xf32>
    %54 = arith.addf %53, %1 : vector<8x32xf32>
    %c0_34 = arith.constant 0 : index
    %c0_35 = arith.constant 0 : index
    %c0_36 = arith.constant 0 : index
    %55 = vector.load %arg10[%c0_34, %c0_35, %c0_36] : memref<1x8x32xf32, #tpu.memory_space<vmem>>, vector<1x8x32xf32>
    %56 = vector.shape_cast %55 : vector<1x8x32xf32> to vector<8x32xf32>
    %57 = vector.shape_cast %54 : vector<8x32xf32> to vector<1x8x32xf32>
    tpu.vector_store %arg10[%c0_34, %c0_35, %c0_36], %57 {strides = array<i32>} : memref<1x8x32xf32, #tpu.memory_space<vmem>>, vector<1x8x32xf32>,
    return
  }
  func.func @transform_0(%arg0: i32, %arg1: i32) -> (i32, i32, i32) {
    %c0_i32 = arith.constant 0 : i32
    %c0_i32_0 = arith.constant 0 : i32
    return %arg0, %arg1, %c0_i32 : i32, i32, i32
  }
  func.func @transform_1(%arg0: i32, %arg1: i32) -> (i32, i32, i32, i32) {
    %c0_i32 = arith.constant 0 : i32
    %c0_i32_0 = arith.constant 0 : i32
    %c0_i32_1 = arith.constant 0 : i32
    %c0_i32_2 = arith.constant 0 : i32
    return %arg0, %c0_i32, %c0_i32_0, %c0_i32_1 : i32, i32, i32, i32
  }
  func.func @transform_2(%arg0: i32, %arg1: i32) -> (i32, i32, i32, i32) {
    %c0_i32 = arith.constant 0 : i32
    %c0_i32_0 = arith.constant 0 : i32
    %c0_i32_1 = arith.constant 0 : i32
    %c0_i32_2 = arith.constant 0 : i32
    return %arg0, %c0_i32, %c0_i32_0, %c0_i32_1 : i32, i32, i32, i32
  }
  func.func @transform_3(%arg0: i32, %arg1: i32) -> (i32, i32, i32) {
    %c0_i32 = arith.constant 0 : i32
    %c0_i32_0 = arith.constant 0 : i32
    %c0_i32_1 = arith.constant 0 : i32
    return %arg0, %c0_i32, %c0_i32_0 : i32, i32, i32
  }
  func.func @transform_4(%arg0: i32, %arg1: i32) -> (i32, i32, i32) {
    %c0_i32 = arith.constant 0 : i32
    %c0_i32_0 = arith.constant 0 : i32
    %c0_i32_1 = arith.constant 0 : i32
    %c0_i32_2 = arith.constant 0 : i32
    return %c0_i32, %c0_i32_0, %c0_i32_1 : i32, i32, i32
  }
  func.func @transform_5(%arg0: i32, %arg1: i32) -> (i32, i32, i32) {
    %c0_i32 = arith.constant 0 : i32
    %c0_i32_0 = arith.constant 0 : i32
    %c0_i32_1 = arith.constant 0 : i32
    %c0_i32_2 = arith.constant 0 : i32
    return %c0_i32, %c0_i32_0, %c0_i32_1 : i32, i32, i32
  }
  func.func @transform_6(%arg0: i32, %arg1: i32) -> (i32, i32) {
    %c0_i32 = arith.constant 0 : i32
    %c0_i32_0 = arith.constant 0 : i32
    %c0_i32_1 = arith.constant 0 : i32
    return %c0_i32, %c0_i32_0 : i32, i32
  }
  func.func @transform_7(%arg0: i32, %arg1: i32) -> (i32, i32) {
    %c0_i32 = arith.constant 0 : i32
    %c0_i32_0 = arith.constant 0 : i32
    %c0_i32_1 = arith.constant 0 : i32
    return %c0_i32, %c0_i32_0 : i32, i32
  }
  func.func @transform_8(%arg0: i32, %arg1: i32) -> (i32, i32, i32) {
    %c0_i32 = arith.constant 0 : i32
    %c0_i32_0 = arith.constant 0 : i32
    return %arg0, %arg1, %c0_i32 : i32, i32, i32
  }
}

</mosaic_0001>

<llo_original>
// kernel: tpu_custom_call.1
$region0: #{tpu_custom_call.1}
  #allocation0 [shape = 'u32[]', space=smem, size = 0x4, offset = 0x4, fixed_abs, tag = 'smem constant byte address 0x4 - core index']
  #allocation1 [shape = 'u32[72,128]{1,0:T(1,128)}', space=vmem, size = 0x9000, scoped, tag = 'internal scratch']
  %s0 = inlined_call_operand.vmem [shape: f32[2,16,32], index: 0, kind: input, shape index: {}]
  %s1 = inlined_call_operand.vmem [shape: f32[2,8,16,4], index: 1, kind: input, shape index: {}]
  %s2 = inlined_call_operand.vmem [shape: f32[2,8,16,4], index: 2, kind: input, shape index: {}]
  %s3 = inlined_call_operand.vmem [shape: f32[2,1,16], index: 3, kind: input, shape index: {}]
  %s4 = inlined_call_operand.vmem [shape: f32[8,32,4], index: 4, kind: input, shape index: {}]
  %s5 = inlined_call_operand.vmem [shape: f32[8,4,32], index: 5, kind: input, shape index: {}]
  %s6 = inlined_call_operand.vmem [shape: f32[1,32], index: 6, kind: input, shape index: {}]
  %s7 = inlined_call_operand.vmem [shape: f32[1,32], index: 7, kind: input, shape index: {}]
  %s8 = inlined_call_operand.hbm [shape: f32[2,16,32], index: 8, kind: output, shape index: {}]
  %s9 = sld [smem:[#allocation0]]
  $region65: #{tpu_custom_call.1} parent=0
    _
  %s11 = ssub.s32 1, %s9
  %s12 = scalar_select 0, %s11, %s9
  $region1: #{tpu_custom_call.1} parent=0
    #allocation2 [shape = 'u8[8192]{0}', space=vmem, size = 0x2000, scoped, tag = 'output window, operand 0']
    #allocation3 [shape = 's32[2]{0}', space=sflag, size = 0x8, scoped, tag = 'scoped memory for tpu_custom_call.1']
    %13 = vsyncpa [#allocation3], 0
    %s14 = scalar_lea.sflag [#allocation3], 1
    %15 = vsyncpa %s14, 0
    loop: start=0, step=1, limit=6
    $region2: #{tpu_custom_call.1} parent=1 // loop_pre_header
      _
    $region3: #{tpu_custom_call.1} parent=1 // loop_header
      %s17 = sphi 0, %s21
      %p18 = scmp.ge.s32.totalorder %s17, 6
      %s24 = sphi 0, %s36
      %s25 = sphi 0, %s32
      %s26 = sphi 0, %s24
      %s27 = sphi 0, %s25
      %s28 = sphi 0, %s26
      %s29 = sphi 0, %s27
      %s41 = sphi 0, %s43
      %s44 = sphi 0, %s41
      %s45 = sphi 0, %s44
      %s61 = sphi 0, %s45
      %s67 = sphi 0, %s69
      %s70 = sphi 0, %s67
      %s71 = sphi 0, %s70
      %s87 = sphi 0, %s71
      %s93 = sphi 0, %s95
      %s96 = sphi 0, %s93
      %s97 = sphi 0, %s96
      %s113 = sphi 0, %s97
      %s119 = sphi 0, %s121
      %s122 = sphi 0, %s119
      %s123 = sphi 0, %s122
      %s139 = sphi 0, %s123
      %s143 = sphi 0, %s143
      %s145 = sphi 0, %s143
      %s146 = sphi 0, %s145
      %s160 = sphi 0, %s146
      %s164 = sphi 0, %s164
      %s166 = sphi 0, %s164
      %s167 = sphi 0, %s166
      %s181 = sphi 0, %s167
      %s185 = sphi 0, %s185
      %s187 = sphi 0, %s185
      %s188 = sphi 0, %s187
      %s202 = sphi 0, %s188
      %s206 = sphi 0, %s206
      %s208 = sphi 0, %s206
      %s209 = sphi 0, %s208
      %s223 = sphi 0, %s209
      %s231 = sphi 0, %s233
      %s234 = sphi 0, %s231
      %s235 = sphi 0, %s234
      %s251 = sphi 0, %s235
    $region4: #{tpu_custom_call.1} parent=1 // loop_header_branch
      %20 = sbr.rel (%p18) target = $region8
    $region5: #{tpu_custom_call.1} parent=1 // loop_body
      %s22 = ssub.s32 %s17, 1
      %s23 = ssub.s32 %s17, 2
      %s30 = sadd.s32 1, %s25
      %p31 = scmp.ge.s32.totalorder %s30, 2
      %s32 = scalar_select %p31, 0, %s30
      %s33 = sadd.s32 1, %s24
      %s34 = scalar_select %p31, %s33, %s24
      %p35 = scmp.ge.s32.totalorder %s34, 2
      %s36 = scalar_select %p35, 0, %s34
      %s37 = ssub.s32 %s24, %s36
      %s38 = ssub.s32 %s25, %s32
      %s39 = sor.u32 %s37, %s38
      %p40 = scmp.eq.s32.totalorder %s39, 0
      %s42 = sadd.s32 %s41, 1
      %s43 = scalar_select %p40, %s41, %s42
      %p46 = pneg %p40
      %p47 = scmp.eq.s32.totalorder %s17, 3
      %p48 = por %p46, %p47
      %p49 = scmp.ne.s32.totalorder %s41, %s44
      %p50 = scmp.eq.s32.totalorder %s17, 0
      %p51 = por %p49, %p50
      %p52 = scmp.ne.s32.totalorder %s41, %s44
      %p53 = scmp.eq.s32.totalorder %s22, 3
      %p54 = por %p52, %p53
      %p55 = scmp.ne.s32.totalorder %s44, %s45
      %p56 = scmp.eq.s32.totalorder %s22, 0
      %p57 = por %p55, %p56
      %p58 = scmp.ne.s32.totalorder %s44, %s45
      %p59 = scmp.eq.s32.totalorder %s23, 3
      %p60 = por %p58, %p59
      %p62 = scmp.ne.s32.totalorder %s45, %s61
      %p63 = scmp.eq.s32.totalorder %s23, 0
      %p64 = por %p62, %p63
      %s65 = ssub.s32 %s24, %s36
      %p66 = scmp.eq.s32.totalorder %s65, 0
      %s68 = sadd.s32 %s67, 1
      %s69 = scalar_select %p66, %s67, %s68
      %p72 = pneg %p66
      %p73 = scmp.eq.s32.totalorder %s17, 3
      %p74 = por %p72, %p73
      %p75 = scmp.ne.s32.totalorder %s67, %s70
      %p76 = scmp.eq.s32.totalorder %s17, 0
      %p77 = por %p75, %p76
      %p78 = scmp.ne.s32.totalorder %s67, %s70
      %p79 = scmp.eq.s32.totalorder %s22, 3
      %p80 = por %p78, %p79
      %p81 = scmp.ne.s32.totalorder %s70, %s71
      %p82 = scmp.eq.s32.totalorder %s22, 0
      %p83 = por %p81, %p82
      %p84 = scmp.ne.s32.totalorder %s70, %s71
      %p85 = scmp.eq.s32.totalorder %s23, 3
      %p86 = por %p84, %p85
      %p88 = scmp.ne.s32.totalorder %s71, %s87
      %p89 = scmp.eq.s32.totalorder %s23, 0
      %p90 = por %p88, %p89
      %s91 = ssub.s32 %s24, %s36
      %p92 = scmp.eq.s32.totalorder %s91, 0
      %s94 = sadd.s32 %s93, 1
      %s95 = scalar_select %p92, %s93, %s94
      %p98 = pneg %p92
      %p99 = scmp.eq.s32.totalorder %s17, 3
      %p100 = por %p98, %p99
      %p101 = scmp.ne.s32.totalorder %s93, %s96
      %p102 = scmp.eq.s32.totalorder %s17, 0
      %p103 = por %p101, %p102
      %p104 = scmp.ne.s32.totalorder %s93, %s96
      %p105 = scmp.eq.s32.totalorder %s22, 3
      %p106 = por %p104, %p105
      %p107 = scmp.ne.s32.totalorder %s96, %s97
      %p108 = scmp.eq.s32.totalorder %s22, 0
      %p109 = por %p107, %p108
      %p110 = scmp.ne.s32.totalorder %s96, %s97
      %p111 = scmp.eq.s32.totalorder %s23, 3
      %p112 = por %p110, %p111
      %p114 = scmp.ne.s32.totalorder %s97, %s113
      %p115 = scmp.eq.s32.totalorder %s23, 0
      %p116 = por %p114, %p115
      %s117 = ssub.s32 %s24, %s36
      %p118 = scmp.eq.s32.totalorder %s117, 0
      %s120 = sadd.s32 %s119, 1
      %s121 = scalar_select %p118, %s119, %s120
      %p124 = pneg %p118
      %p125 = scmp.eq.s32.totalorder %s17, 3
      %p126 = por %p124, %p125
      %p127 = scmp.ne.s32.totalorder %s119, %s122
      %p128 = scmp.eq.s32.totalorder %s17, 0
      %p129 = por %p127, %p128
      %p130 = scmp.ne.s32.totalorder %s119, %s122
      %p131 = scmp.eq.s32.totalorder %s22, 3
      %p132 = por %p130, %p131
      %p133 = scmp.ne.s32.totalorder %s122, %s123
      %p134 = scmp.eq.s32.totalorder %s22, 0
      %p135 = por %p133, %p134
      %p136 = scmp.ne.s32.totalorder %s122, %s123
      %p137 = scmp.eq.s32.totalorder %s23, 3
      %p138 = por %p136, %p137
      %p140 = scmp.ne.s32.totalorder %s123, %s139
      %p141 = scmp.eq.s32.totalorder %s23, 0
      %p142 = por %p140, %p141
      %s144 = sadd.s32 %s143, 1
      %p147 = scmp.eq.s32.totalorder %s17, 3
      %p148 = scmp.ne.s32.totalorder %s143, %s145
      %p149 = scmp.eq.s32.totalorder %s17, 0
      %p150 = por %p148, %p149
      %p151 = scmp.ne.s32.totalorder %s143, %s145
      %p152 = scmp.eq.s32.totalorder %s22, 3
      %p153 = por %p151, %p152
      %p154 = scmp.ne.s32.totalorder %s145, %s146
      %p155 = scmp.eq.s32.totalorder %s22, 0
      %p156 = por %p154, %p155
      %p157 = scmp.ne.s32.totalorder %s145, %s146
      %p158 = scmp.eq.s32.totalorder %s23, 3
      %p159 = por %p157, %p158
      %p161 = scmp.ne.s32.totalorder %s146, %s160
      %p162 = scmp.eq.s32.totalorder %s23, 0
      %p163 = por %p161, %p162
      %s165 = sadd.s32 %s164, 1
      %p168 = scmp.eq.s32.totalorder %s17, 3
      %p169 = scmp.ne.s32.totalorder %s164, %s166
      %p170 = scmp.eq.s32.totalorder %s17, 0
      %p171 = por %p169, %p170
      %p172 = scmp.ne.s32.totalorder %s164, %s166
      %p173 = scmp.eq.s32.totalorder %s22, 3
      %p174 = por %p172, %p173
      %p175 = scmp.ne.s32.totalorder %s166, %s167
      %p176 = scmp.eq.s32.totalorder %s22, 0
      %p177 = por %p175, %p176
      %p178 = scmp.ne.s32.totalorder %s166, %s167
      %p179 = scmp.eq.s32.totalorder %s23, 3
      %p180 = por %p178, %p179
      %p182 = scmp.ne.s32.totalorder %s167, %s181
      %p183 = scmp.eq.s32.totalorder %s23, 0
      %p184 = por %p182, %p183
      %s186 = sadd.s32 %s185, 1
      %p189 = scmp.eq.s32.totalorder %s17, 3
      %p190 = scmp.ne.s32.totalorder %s185, %s187
      %p191 = scmp.eq.s32.totalorder %s17, 0
      %p192 = por %p190, %p191
      %p193 = scmp.ne.s32.totalorder %s185, %s187
      %p194 = scmp.eq.s32.totalorder %s22, 3
      %p195 = por %p193, %p194
      %p196 = scmp.ne.s32.totalorder %s187, %s188
      %p197 = scmp.eq.s32.totalorder %s22, 0
      %p198 = por %p196, %p197
      %p199 = scmp.ne.s32.totalorder %s187, %s188
      %p200 = scmp.eq.s32.totalorder %s23, 3
      %p201 = por %p199, %p200
      %p203 = scmp.ne.s32.totalorder %s188, %s202
      %p204 = scmp.eq.s32.totalorder %s23, 0
      %p205 = por %p203, %p204
      %s207 = sadd.s32 %s206, 1
      %p210 = scmp.eq.s32.totalorder %s17, 3
      %p211 = scmp.ne.s32.totalorder %s206, %s208
      %p212 = scmp.eq.s32.totalorder %s17, 0
      %p213 = por %p211, %p212
      %p214 = scmp.ne.s32.totalorder %s206, %s208
      %p215 = scmp.eq.s32.totalorder %s22, 3
      %p216 = por %p214, %p215
      %p217 = scmp.ne.s32.totalorder %s208, %s209
      %p218 = scmp.eq.s32.totalorder %s22, 0
      %p219 = por %p217, %p218
      %p220 = scmp.ne.s32.totalorder %s208, %s209
      %p221 = scmp.eq.s32.totalorder %s23, 3
      %p222 = por %p220, %p221
      %p224 = scmp.ne.s32.totalorder %s209, %s223
      %p225 = scmp.eq.s32.totalorder %s23, 0
      %p226 = por %p224, %p225
      %s227 = ssub.s32 %s24, %s36
      %s228 = ssub.s32 %s25, %s32
      %s229 = sor.u32 %s227, %s228
      %p230 = scmp.eq.s32.totalorder %s229, 0
      %s232 = sadd.s32 %s231, 1
      %s233 = scalar_select %p230, %s231, %s232
      %p236 = pneg %p230
      %p237 = scmp.eq.s32.totalorder %s17, 3
      %p238 = por %p236, %p237
      %p239 = scmp.ne.s32.totalorder %s231, %s234
      %p240 = scmp.eq.s32.totalorder %s17, 0
      %p241 = por %p239, %p240
      %p242 = scmp.ne.s32.totalorder %s231, %s234
      %p243 = scmp.eq.s32.totalorder %s22, 3
      %p244 = por %p242, %p243
      %p245 = scmp.ne.s32.totalorder %s234, %s235
      %p246 = scmp.eq.s32.totalorder %s22, 0
      %p247 = por %p245, %p246
      %p248 = scmp.ne.s32.totalorder %s234, %s235
      %p249 = scmp.eq.s32.totalorder %s23, 3
      %p250 = por %p248, %p249
      %p252 = scmp.ne.s32.totalorder %s235, %s251
      %p253 = scmp.eq.s32.totalorder %s23, 0
      %p254 = por %p252, %p253
      %p255 = scmp.le.s32.totalorder 1, %s17
      %p256 = scmp.lt.s32.totalorder %s17, 5
      %p257 = pnand %p255, %p256
      %p258 = pneg %p257
      // Predicated region
      $region9: #{tpu_custom_call.1} parent=5 // pred_check
        _
      $region10: #{tpu_custom_call.1} parent=5 // pred_check_branch
        %260 = sbr.rel (%p257) target = $region12
      $region11: #{tpu_custom_call.1} parent=5 // pred_region
        %s261 = ssub.s32 %s17, 1
        // Predicated region
        $region13: #{tpu_custom_call.1} parent=11 // pred_check
          %p262 = pneg %p156
        $region14: #{tpu_custom_call.1} parent=11 // pred_check_branch
          %264 = sbr.rel (%p262) target = $region16
        $region15: #{tpu_custom_call.1} parent=11 // pred_region
          _
        $region16: #{tpu_custom_call.1} parent=11 // pred_fallthru
          _
        // Predicated region
        $region17: #{tpu_custom_call.1} parent=11 // pred_check
          %p265 = pneg %p177
        $region18: #{tpu_custom_call.1} parent=11 // pred_check_branch
          %267 = sbr.rel (%p265) target = $region20
        $region19: #{tpu_custom_call.1} parent=11 // pred_region
          _
        $region20: #{tpu_custom_call.1} parent=11 // pred_fallthru
          _
        // Predicated region
        $region21: #{tpu_custom_call.1} parent=11 // pred_check
          %p268 = pneg %p198
        $region22: #{tpu_custom_call.1} parent=11 // pred_check_branch
          %270 = sbr.rel (%p268) target = $region24
        $region23: #{tpu_custom_call.1} parent=11 // pred_region
          _
        $region24: #{tpu_custom_call.1} parent=11 // pred_fallthru
          _
        // Predicated region
        $region25: #{tpu_custom_call.1} parent=11 // pred_check
          %p271 = pneg %p219
        $region26: #{tpu_custom_call.1} parent=11 // pred_check_branch
          %273 = sbr.rel (%p271) target = $region28
        $region27: #{tpu_custom_call.1} parent=11 // pred_region
          _
        $region28: #{tpu_custom_call.1} parent=11 // pred_fallthru
          _
      $region12: #{tpu_custom_call.1} parent=5 // pred_fallthru
        _
      %p274 = scmp.lt.s32.totalorder %s17, 4
      // Predicated region
      $region29: #{tpu_custom_call.1} parent=5 // pred_check
        %p275 = pneg %p274
      $region30: #{tpu_custom_call.1} parent=5 // pred_check_branch
        %277 = sbr.rel (%p275) target = $region32
      $region31: #{tpu_custom_call.1} parent=5 // pred_region
        // Predicated region
        $region33: #{tpu_custom_call.1} parent=31 // pred_check
          %p278 = pneg %p51
        $region34: #{tpu_custom_call.1} parent=31 // pred_check_branch
          %280 = sbr.rel (%p278) target = $region36
        $region35: #{tpu_custom_call.1} parent=31 // pred_region
          %p281 = scmp.lt.s32.totalorder %s24, 1
          %s282 = scalar_select %p281, %s24, 1
          %p283 = scmp.lt.s32.totalorder %s25, 1
          %s284 = scalar_select %p283, %s25, 1
          %s285 = smul.addr %s282, 2
          %s286 = sadd.s32 %s284, %s285
          %s287 = smul.addr %s286, 8
          %s288 = scalar_lea.vmem %s0, %s287
        $region36: #{tpu_custom_call.1} parent=31 // pred_fallthru
          _
        // Predicated region
        $region37: #{tpu_custom_call.1} parent=31 // pred_check
          %p289 = pneg %p77
        $region38: #{tpu_custom_call.1} parent=31 // pred_check_branch
          %291 = sbr.rel (%p289) target = $region40
        $region39: #{tpu_custom_call.1} parent=31 // pred_region
          %p292 = scmp.lt.s32.totalorder %s24, 1
          %s293 = scalar_select %p292, %s24, 1
          %s294 = smul.addr %s293, 16
          %s295 = smul.addr %s294, 8
          %s296 = scalar_lea.vmem %s1, %s295
        $region40: #{tpu_custom_call.1} parent=31 // pred_fallthru
          _
        // Predicated region
        $region41: #{tpu_custom_call.1} parent=31 // pred_check
          %p297 = pneg %p103
        $region42: #{tpu_custom_call.1} parent=31 // pred_check_branch
          %299 = sbr.rel (%p297) target = $region44
        $region43: #{tpu_custom_call.1} parent=31 // pred_region
          %p300 = scmp.lt.s32.totalorder %s24, 1
          %s301 = scalar_select %p300, %s24, 1
          %s302 = smul.addr %s301, 16
          %s303 = smul.addr %s302, 8
          %s304 = scalar_lea.vmem %s2, %s303
        $region44: #{tpu_custom_call.1} parent=31 // pred_fallthru
          _
        // Predicated region
        $region45: #{tpu_custom_call.1} parent=31 // pred_check
          %p305 = pneg %p129
        $region46: #{tpu_custom_call.1} parent=31 // pred_check_branch
          %307 = sbr.rel (%p305) target = $region48
        $region47: #{tpu_custom_call.1} parent=31 // pred_region
          %p308 = scmp.lt.s32.totalorder %s24, 1
          %s309 = scalar_select %p308, %s24, 1
          %s310 = scalar_lea.vmem %s3, %s309
        $region48: #{tpu_custom_call.1} parent=31 // pred_fallthru
          _
      $region32: #{tpu_custom_call.1} parent=5 // pred_fallthru
        _
      %p311 = scmp.le.s32.totalorder 1, %s17
      %p312 = scmp.lt.s32.totalorder %s17, 5
      %p313 = pnand %p311, %p312
      %p314 = pneg %p313
      // Predicated region
      $region49: #{tpu_custom_call.1} parent=5 // pred_check
        _
      $region50: #{tpu_custom_call.1} parent=5 // pred_check_branch
        %316 = sbr.rel (%p313) target = $region52
      $region51: #{tpu_custom_call.1} parent=5 // pred_region
        %s317 = ssub.s32 %s17, 1
        %p318 = scmp.lt.s32.totalorder %s26, 1
        %s319 = scalar_select %p318, %s26, 1
        %p320 = scmp.lt.s32.totalorder %s27, 1
        %s321 = scalar_select %p320, %s27, 1
        %s322 = smul.addr %s319, 2
        %s323 = sadd.s32 %s321, %s322
        %s324 = smul.addr %s323, 8
        %s325 = scalar_lea.vmem %s0, %s324
        %p326 = pneg %p57
        %p327 = pneg %p54
        %p328 = scmp.lt.s32.totalorder %s26, 1
        %s329 = scalar_select %p328, %s26, 1
        %s330 = smul.addr %s329, 16
        %s331 = smul.addr %s330, 8
        %s332 = scalar_lea.vmem %s1, %s331
        %p333 = pneg %p83
        %p334 = pneg %p80
        %p335 = scmp.lt.s32.totalorder %s26, 1
        %s336 = scalar_select %p335, %s26, 1
        %s337 = smul.addr %s336, 16
        %s338 = smul.addr %s337, 8
        %s339 = scalar_lea.vmem %s2, %s338
        %p340 = pneg %p109
        %p341 = pneg %p106
        %p342 = scmp.lt.s32.totalorder %s26, 1
        %s343 = scalar_select %p342, %s26, 1
        %s344 = scalar_lea.vmem %s3, %s343
        %p345 = pneg %p135
        %p346 = pneg %p132
        %p347 = pneg %p156
        %p348 = pneg %p153
        %p349 = pneg %p177
        %p350 = pneg %p174
        %p351 = pneg %p198
        %p352 = pneg %p195
        %p353 = pneg %p219
        %p354 = pneg %p216
        %p355 = pneg %p247
        %p356 = pneg %p244
        %s357 = sand.u32 %s234, 1
        %s358 = scalar_lea.sflag [#allocation3], %s357
        %s359 = sand.u32 %s234, 1
        %s360 = smul.addr %s359, 8
        %s361 = scalar_lea.vmem [#allocation2], %s360
        %p362 = scmp.lt.s32.totalorder %s26, 1
        %s363 = scalar_select %p362, %s26, 1
        %p364 = scmp.lt.s32.totalorder %s27, 1
        %s365 = scalar_select %p364, %s27, 1
        %s366 = smul.addr %s363, 2
        %s367 = sadd.s32 %s365, %s366
        %s368 = smul.addr %s367, 8
        %s369 = scalar_lea.vmem %s0, %s368
        %p370 = scmp.lt.s32.totalorder %s26, 1
        %s371 = scalar_select %p370, %s26, 1
        %s372 = smul.addr %s371, 16
        %s373 = smul.addr %s372, 8
        %s374 = scalar_lea.vmem %s1, %s373
        %p375 = scmp.lt.s32.totalorder %s26, 1
        %s376 = scalar_select %p375, %s26, 1
        %s377 = smul.addr %s376, 16
        %s378 = smul.addr %s377, 8
        %s379 = scalar_lea.vmem %s2, %s378
        %p380 = scmp.lt.s32.totalorder %s26, 1
        %s381 = scalar_select %p380, %s26, 1
        %s382 = scalar_lea.vmem %s3, %s381
        %v383 = vld [vmem:[%s369] sm:$0xff]
        %vm384 = vcmask 261120
        %v385 = vsel %vm384, %v383, 0.0
        %386 = vadd.xlane.f32.xlu0 %v385
        %v387 = vpop.xlane.xlu0 %386
        %v388 = vrcp.pop 32.0
        %v389 = vmul.f32 32.0, %v388
        %v390 = vsub.f32 1.0, %v389
        %v391 = vmul.f32 %v388, %v390
        %v392 = vadd.f32 %v388, %v391
        %vm393 = vweird.f32 %v388
        %v394 = vsel %vm393, %v388, %v392
        %v395 = vmul.f32 %v387, %v394
        %v396 = vsub.f32 %v383, %v395
        %v397 = vmul.f32 %v396, %v396
        %v398 = vsel %vm384, %v397, 0.0
        %399 = vadd.xlane.f32.xlu0 %v398
        %v400 = vpop.xlane.xlu0 %399
        %v401 = vmul.f32 %v400, 0.032258064
        %v402 = vrsqrt.pop %v401
        %v403 = vmul.f32 %v402, %v401
        %v404 = vmul.f32 %v403, %v402
        %v405 = vmul.f32 0.5, %v404
        %v406 = vsub.f32 1.5, %v405
        %v407 = vmul.f32 %v402, %v406
        %v408 = vmul.f32 %v401, %v407
        %vm409 = vcmp.eq.f32.partialorder %v401, inf
        %v410 = vsel %vm409, %v401, %v408
        %vm411 = vcmp.eq.f32.partialorder %v401, 0.0
        %v412 = vand.u32 %v401, 2147483648
        %v413 = vsel %vm411, %v412, %v410
        %v414 = vadd.f32 %v413, 1e-06
        %v415 = vrcp.pop %v414
        %v416 = vmul.f32 %v414, %v415
        %v417 = vsub.f32 1.0, %v416
        %v418 = vmul.f32 %v415, %v417
        %v419 = vadd.f32 %v415, %v418
        %vm420 = vweird.f32 %v414
        %vm421 = vweird.f32 %v415
        %vm422 = vmor %vm420, %vm421
        %v423 = vsel %vm422, %v415, %v419
        %v424 = vand.u32 2147483647, %v414
        %vm425 = vcmp.eq.f32.partialorder %v424, 8.507059e+37
        %v426 = vand.u32 %v414, 2147483648
        %v427 = vor.u32 1.1754944e-38, %v426
        %v428 = vsel %vm425, %v427, %v423
        %v429 = vld [vmem:[%s6] sm:$0x1]
        %v430 = vmul.f32 %v396, %v428
        %v432 = vperm.slane %v429, 0
        %v434 = vmul.f32 %v432, %v430
        %v435 = vld [vmem:[%s7] sm:$0x1]
        %v437 = vperm.slane %v435, 0
        %v439 = vadd.f32 %v434, %v437
        %v440 = vld [vmem:[%s4] sm:$0xff]
        %v441 = vld [vmem:[%s4 + $0x8] sm:$0xff]
        %v442 = vld [vmem:[%s4 + $0x10] sm:$0xff]
        %v443 = vld [vmem:[%s4 + $0x18] sm:$0xff]
        %v444 = vld [vmem:[%s4 + $0x20] sm:$0xff]
        %v445 = vld [vmem:[%s4 + $0x28] sm:$0xff]
        %v446 = vld [vmem:[%s4 + $0x30] sm:$0xff]
        %v447 = vld [vmem:[%s4 + $0x38] sm:$0xff]
        %v448 = vld [vmem:[%s4 + $0x40] sm:$0xff]
        %v449 = vld [vmem:[%s4 + $0x48] sm:$0xff]
        %v450 = vld [vmem:[%s4 + $0x50] sm:$0xff]
        %v451 = vld [vmem:[%s4 + $0x58] sm:$0xff]
        %v452 = vld [vmem:[%s4 + $0x60] sm:$0xff]
        %v453 = vld [vmem:[%s4 + $0x68] sm:$0xff]
        %v454 = vld [vmem:[%s4 + $0x70] sm:$0xff]
        %v455 = vld [vmem:[%s4 + $0x78] sm:$0xff]
        %v456 = vld [vmem:[%s4 + $0x80] sm:$0xff]
        %v457 = vld [vmem:[%s4 + $0x88] sm:$0xff]
        %v458 = vld [vmem:[%s4 + $0x90] sm:$0xff]
        %v459 = vld [vmem:[%s4 + $0x98] sm:$0xff]
        %v460 = vld [vmem:[%s4 + $0xa0] sm:$0xff]
        %v461 = vld [vmem:[%s4 + $0xa8] sm:$0xff]
        %v462 = vld [vmem:[%s4 + $0xb0] sm:$0xff]
        %v463 = vld [vmem:[%s4 + $0xb8] sm:$0xff]
        %v464 = vld [vmem:[%s4 + $0xc0] sm:$0xff]
        %v465 = vld [vmem:[%s4 + $0xc8] sm:$0xff]
        %v466 = vld [vmem:[%s4 + $0xd0] sm:$0xff]
        %v467 = vld [vmem:[%s4 + $0xd8] sm:$0xff]
        %v468 = vld [vmem:[%s4 + $0xe0] sm:$0xff]
        %v469 = vld [vmem:[%s4 + $0xe8] sm:$0xff]
        %v470 = vld [vmem:[%s4 + $0xf0] sm:$0xff]
        %v471 = vld [vmem:[%s4 + $0xf8] sm:$0xff]
        %v473 = vsel %vm384, %v439, 0
        %475 = vmatpush.msra.mxu0 0.0
        %476 = vmatpush.msra.mxu0 0.0
        %477 = vmatpush.msra.mxu0 0.0
        %478 = vmatpush.msra.mxu0 0.0
        %479 = vmatpush.msra.mxu0 0.0
        %480 = vmatpush.msra.mxu0 0.0
        %481 = vmatpush.msra.mxu0 0.0
        %482 = vmatpush.msra.mxu0 0.0
        %483 = vmatpush.msra.mxu0 0.0
        %484 = vmatpush.msra.mxu0 0.0
        %485 = vmatpush.msra.mxu0 0.0
        %486 = vmatpush.msra.mxu0 0.0
        %487 = vmatpush.msra.mxu0 %v443
        %488 = vmatpush.msra.mxu0 %v442
        %489 = vmatpush.msra.mxu0 %v441
        %490 = vmatpush.msra.mxu0 %v440
        %491 = vmatmul.f32.gmra.mxu0 %v473
        %v492 = vpop.f32.mrf.mxu0
        %v493 = vadd.f32 0.0, %v492
        %494 = vdwg.mxu0
        %495 = vmatpush.msra.mxu0 0.0
        %496 = vmatpush.msra.mxu0 0.0
        %497 = vmatpush.msra.mxu0 0.0
        %498 = vmatpush.msra.mxu0 0.0
        %499 = vmatpush.msra.mxu0 0.0
        %500 = vmatpush.msra.mxu0 0.0
        %501 = vmatpush.msra.mxu0 0.0
        %502 = vmatpush.msra.mxu0 0.0
        %503 = vmatpush.msra.mxu0 0.0
        %504 = vmatpush.msra.mxu0 0.0
        %505 = vmatpush.msra.mxu0 0.0
        %506 = vmatpush.msra.mxu0 0.0
        %507 = vmatpush.msra.mxu0 %v447
        %508 = vmatpush.msra.mxu0 %v446
        %509 = vmatpush.msra.mxu0 %v445
        %510 = vmatpush.msra.mxu0 %v444
        %511 = vmatmul.f32.gmra.mxu0 %v473
        %v512 = vpop.f32.mrf.mxu0
        %v513 = vadd.f32 0.0, %v512
        %514 = vdwg.mxu0
        %515 = vmatpush.msra.mxu0 0.0
        %516 = vmatpush.msra.mxu0 0.0
        %517 = vmatpush.msra.mxu0 0.0
        %518 = vmatpush.msra.mxu0 0.0
        %519 = vmatpush.msra.mxu0 0.0
        %520 = vmatpush.msra.mxu0 0.0
        %521 = vmatpush.msra.mxu0 0.0
        %522 = vmatpush.msra.mxu0 0.0
        %523 = vmatpush.msra.mxu0 0.0
        %524 = vmatpush.msra.mxu0 0.0
        %525 = vmatpush.msra.mxu0 0.0
        %526 = vmatpush.msra.mxu0 0.0
        %527 = vmatpush.msra.mxu0 %v451
        %528 = vmatpush.msra.mxu0 %v450
        %529 = vmatpush.msra.mxu0 %v449
        %530 = vmatpush.msra.mxu0 %v448
        %531 = vmatmul.f32.gmra.mxu0 %v473
        %v532 = vpop.f32.mrf.mxu0
        %v533 = vadd.f32 0.0, %v532
        %534 = vdwg.mxu0
        %535 = vmatpush.msra.mxu0 0.0
        %536 = vmatpush.msra.mxu0 0.0
        %537 = vmatpush.msra.mxu0 0.0
        %538 = vmatpush.msra.mxu0 0.0
        %539 = vmatpush.msra.mxu0 0.0
        %540 = vmatpush.msra.mxu0 0.0
        %541 = vmatpush.msra.mxu0 0.0
        %542 = vmatpush.msra.mxu0 0.0
        %543 = vmatpush.msra.mxu0 0.0
        %544 = vmatpush.msra.mxu0 0.0
        %545 = vmatpush.msra.mxu0 0.0
        %546 = vmatpush.msra.mxu0 0.0
        %547 = vmatpush.msra.mxu0 %v455
        %548 = vmatpush.msra.mxu0 %v454
        %549 = vmatpush.msra.mxu0 %v453
        %550 = vmatpush.msra.mxu0 %v452
        %551 = vmatmul.f32.gmra.mxu0 %v473
        %v552 = vpop.f32.mrf.mxu0
        %v553 = vadd.f32 0.0, %v552
        %554 = vdwg.mxu0
        %555 = vmatpush.msra.mxu0 0.0
        %556 = vmatpush.msra.mxu0 0.0
        %557 = vmatpush.msra.mxu0 0.0
        %558 = vmatpush.msra.mxu0 0.0
        %559 = vmatpush.msra.mxu0 0.0
        %560 = vmatpush.msra.mxu0 0.0
        %561 = vmatpush.msra.mxu0 0.0
        %562 = vmatpush.msra.mxu0 0.0
        %563 = vmatpush.msra.mxu0 0.0
        %564 = vmatpush.msra.mxu0 0.0
        %565 = vmatpush.msra.mxu0 0.0
        %566 = vmatpush.msra.mxu0 0.0
        %567 = vmatpush.msra.mxu0 %v459
        %568 = vmatpush.msra.mxu0 %v458
        %569 = vmatpush.msra.mxu0 %v457
        %570 = vmatpush.msra.mxu0 %v456
        %571 = vmatmul.f32.gmra.mxu0 %v473
        %v572 = vpop.f32.mrf.mxu0
        %v573 = vadd.f32 0.0, %v572
        %574 = vdwg.mxu0
        %575 = vmatpush.msra.mxu0 0.0
        %576 = vmatpush.msra.mxu0 0.0
        %577 = vmatpush.msra.mxu0 0.0
        %578 = vmatpush.msra.mxu0 0.0
        %579 = vmatpush.msra.mxu0 0.0
        %580 = vmatpush.msra.mxu0 0.0
        %581 = vmatpush.msra.mxu0 0.0
        %582 = vmatpush.msra.mxu0 0.0
        %583 = vmatpush.msra.mxu0 0.0
        %584 = vmatpush.msra.mxu0 0.0
        %585 = vmatpush.msra.mxu0 0.0
        %586 = vmatpush.msra.mxu0 0.0
        %587 = vmatpush.msra.mxu0 %v463
        %588 = vmatpush.msra.mxu0 %v462
        %589 = vmatpush.msra.mxu0 %v461
        %590 = vmatpush.msra.mxu0 %v460
        %591 = vmatmul.f32.gmra.mxu0 %v473
        %v592 = vpop.f32.mrf.mxu0
        %v593 = vadd.f32 0.0, %v592
        %594 = vdwg.mxu0
        %595 = vmatpush.msra.mxu0 0.0
        %596 = vmatpush.msra.mxu0 0.0
        %597 = vmatpush.msra.mxu0 0.0
        %598 = vmatpush.msra.mxu0 0.0
        %599 = vmatpush.msra.mxu0 0.0
        %600 = vmatpush.msra.mxu0 0.0
        %601 = vmatpush.msra.mxu0 0.0
        %602 = vmatpush.msra.mxu0 0.0
        %603 = vmatpush.msra.mxu0 0.0
        %604 = vmatpush.msra.mxu0 0.0
        %605 = vmatpush.msra.mxu0 0.0
        %606 = vmatpush.msra.mxu0 0.0
        %607 = vmatpush.msra.mxu0 %v467
        %608 = vmatpush.msra.mxu0 %v466
        %609 = vmatpush.msra.mxu0 %v465
        %610 = vmatpush.msra.mxu0 %v464
        %611 = vmatmul.f32.gmra.mxu0 %v473
        %v612 = vpop.f32.mrf.mxu0
        %v613 = vadd.f32 0.0, %v612
        %614 = vdwg.mxu0
        %615 = vmatpush.msra.mxu0 0.0
        %616 = vmatpush.msra.mxu0 0.0
        %617 = vmatpush.msra.mxu0 0.0
        %618 = vmatpush.msra.mxu0 0.0
        %619 = vmatpush.msra.mxu0 0.0
        %620 = vmatpush.msra.mxu0 0.0
        %621 = vmatpush.msra.mxu0 0.0
        %622 = vmatpush.msra.mxu0 0.0
        %623 = vmatpush.msra.mxu0 0.0
        %624 = vmatpush.msra.mxu0 0.0
        %625 = vmatpush.msra.mxu0 0.0
        %626 = vmatpush.msra.mxu0 0.0
        %627 = vmatpush.msra.mxu0 %v471
        %628 = vmatpush.msra.mxu0 %v470
        %629 = vmatpush.msra.mxu0 %v469
        %630 = vmatpush.msra.mxu0 %v468
        %631 = vmatmul.f32.gmra.mxu0 %v473
        %v632 = vpop.f32.mrf.mxu0
        %v633 = vadd.f32 0.0, %v632
        %634 = vdwg.mxu0
        %v635 = vld [vmem:[%s374] sm:$0xff]
        %v636 = vld [vmem:[%s374 + $0x8] sm:$0xff]
        %v637 = vld [vmem:[%s374 + $0x10] sm:$0xff]
        %v638 = vld [vmem:[%s374 + $0x18] sm:$0xff]
        %v639 = vld [vmem:[%s374 + $0x20] sm:$0xff]
        %v640 = vld [vmem:[%s374 + $0x28] sm:$0xff]
        %v641 = vld [vmem:[%s374 + $0x30] sm:$0xff]
        %v642 = vld [vmem:[%s374 + $0x38] sm:$0xff]
        %v643 = vld [vmem:[%s374 + $0x40] sm:$0xff]
        %v644 = vld [vmem:[%s374 + $0x48] sm:$0xff]
        %v645 = vld [vmem:[%s374 + $0x50] sm:$0xff]
        %v646 = vld [vmem:[%s374 + $0x58] sm:$0xff]
        %v647 = vld [vmem:[%s374 + $0x60] sm:$0xff]
        %v648 = vld [vmem:[%s374 + $0x68] sm:$0xff]
        %v649 = vld [vmem:[%s374 + $0x70] sm:$0xff]
        %v650 = vld [vmem:[%s374 + $0x78] sm:$0xff]
        %v651 = vld [vmem:[%s379] sm:$0xff]
        %v652 = vld [vmem:[%s379 + $0x8] sm:$0xff]
        %v653 = vld [vmem:[%s379 + $0x10] sm:$0xff]
        %v654 = vld [vmem:[%s379 + $0x18] sm:$0xff]
        %v655 = vld [vmem:[%s379 + $0x20] sm:$0xff]
        %v656 = vld [vmem:[%s379 + $0x28] sm:$0xff]
        %v657 = vld [vmem:[%s379 + $0x30] sm:$0xff]
        %v658 = vld [vmem:[%s379 + $0x38] sm:$0xff]
        %v659 = vld [vmem:[%s379 + $0x40] sm:$0xff]
        %v660 = vld [vmem:[%s379 + $0x48] sm:$0xff]
        %v661 = vld [vmem:[%s379 + $0x50] sm:$0xff]
        %v662 = vld [vmem:[%s379 + $0x58] sm:$0xff]
        %v663 = vld [vmem:[%s379 + $0x60] sm:$0xff]
        %v664 = vld [vmem:[%s379 + $0x68] sm:$0xff]
        %v665 = vld [vmem:[%s379 + $0x70] sm:$0xff]
        %v666 = vld [vmem:[%s379 + $0x78] sm:$0xff]
        %v667 = vld [vmem:[%s382] sm:$0x1]
        %v669 = vperm.slane %v667, 0
        %vm671 = vcmask 31744
        %v673 = vsel %vm671, %v493, 0
        %v676 = vsel %vm671, %v635, 0
        %v679 = vsel %vm671, %v636, 0
        %681 = vmatpush.xpose.msra.mxu0 0.0
        %682 = vmatpush.xpose.msra.mxu0 0.0
        %683 = vmatpush.xpose.msra.mxu0 0.0
        %684 = vmatpush.xpose.msra.mxu0 0.0
        %685 = vmatpush.xpose.msra.mxu0 0.0
        %686 = vmatpush.xpose.msra.mxu0 0.0
        %687 = vmatpush.xpose.msra.mxu0 0.0
        %688 = vmatpush.xpose.msra.mxu0 0.0
        %689 = vmatpush.xpose.msra.mxu0 0.0
        %690 = vmatpush.xpose.msra.mxu0 0.0
        %691 = vmatpush.xpose.msra.mxu0 0.0
        %692 = vmatpush.xpose.msra.mxu0 0.0
        %693 = vmatpush.xpose.msra.mxu0 0.0
        %694 = vmatpush.xpose.msra.mxu0 0.0
        %695 = vmatpush.xpose.msra.mxu0 %v679
        %696 = vmatpush.xpose.msra.mxu0 %v676
        %697 = vmatmul.f32.gmra.mxu0 %v673
        %v698 = vpop.f32.mrf.mxu0
        %v699 = vadd.f32 %v669, %v698
        %700 = vdwg.mxu0
        %v702 = vsel %vm671, %v513, 0
        %v705 = vsel %vm671, %v637, 0
        %v708 = vsel %vm671, %v638, 0
        %710 = vmatpush.xpose.msra.mxu0 0.0
        %711 = vmatpush.xpose.msra.mxu0 0.0
        %712 = vmatpush.xpose.msra.mxu0 0.0
        %713 = vmatpush.xpose.msra.mxu0 0.0
        %714 = vmatpush.xpose.msra.mxu0 0.0
        %715 = vmatpush.xpose.msra.mxu0 0.0
        %716 = vmatpush.xpose.msra.mxu0 0.0
        %717 = vmatpush.xpose.msra.mxu0 0.0
        %718 = vmatpush.xpose.msra.mxu0 0.0
        %719 = vmatpush.xpose.msra.mxu0 0.0
        %720 = vmatpush.xpose.msra.mxu0 0.0
        %721 = vmatpush.xpose.msra.mxu0 0.0
        %722 = vmatpush.xpose.msra.mxu0 0.0
        %723 = vmatpush.xpose.msra.mxu0 0.0
        %724 = vmatpush.xpose.msra.mxu0 %v708
        %725 = vmatpush.xpose.msra.mxu0 %v705
        %726 = vmatmul.f32.gmra.mxu0 %v702
        %v727 = vpop.f32.mrf.mxu0
        %v728 = vadd.f32 %v669, %v727
        %729 = vdwg.mxu0
        %v731 = vsel %vm671, %v533, 0
        %v734 = vsel %vm671, %v639, 0
        %v737 = vsel %vm671, %v640, 0
        %739 = vmatpush.xpose.msra.mxu0 0.0
        %740 = vmatpush.xpose.msra.mxu0 0.0
        %741 = vmatpush.xpose.msra.mxu0 0.0
        %742 = vmatpush.xpose.msra.mxu0 0.0
        %743 = vmatpush.xpose.msra.mxu0 0.0
        %744 = vmatpush.xpose.msra.mxu0 0.0
        %745 = vmatpush.xpose.msra.mxu0 0.0
        %746 = vmatpush.xpose.msra.mxu0 0.0
        %747 = vmatpush.xpose.msra.mxu0 0.0
        %748 = vmatpush.xpose.msra.mxu0 0.0
        %749 = vmatpush.xpose.msra.mxu0 0.0
        %750 = vmatpush.xpose.msra.mxu0 0.0
        %751 = vmatpush.xpose.msra.mxu0 0.0
        %752 = vmatpush.xpose.msra.mxu0 0.0
        %753 = vmatpush.xpose.msra.mxu0 %v737
        %754 = vmatpush.xpose.msra.mxu0 %v734
        %755 = vmatmul.f32.gmra.mxu0 %v731
        %v756 = vpop.f32.mrf.mxu0
        %v757 = vadd.f32 %v669, %v756
        %758 = vdwg.mxu0
        %v760 = vsel %vm671, %v553, 0
        %v763 = vsel %vm671, %v641, 0
        %v766 = vsel %vm671, %v642, 0
        %768 = vmatpush.xpose.msra.mxu0 0.0
        %769 = vmatpush.xpose.msra.mxu0 0.0
        %770 = vmatpush.xpose.msra.mxu0 0.0
        %771 = vmatpush.xpose.msra.mxu0 0.0
        %772 = vmatpush.xpose.msra.mxu0 0.0
        %773 = vmatpush.xpose.msra.mxu0 0.0
        %774 = vmatpush.xpose.msra.mxu0 0.0
        %775 = vmatpush.xpose.msra.mxu0 0.0
        %776 = vmatpush.xpose.msra.mxu0 0.0
        %777 = vmatpush.xpose.msra.mxu0 0.0
        %778 = vmatpush.xpose.msra.mxu0 0.0
        %779 = vmatpush.xpose.msra.mxu0 0.0
        %780 = vmatpush.xpose.msra.mxu0 0.0
        %781 = vmatpush.xpose.msra.mxu0 0.0
        %782 = vmatpush.xpose.msra.mxu0 %v766
        %783 = vmatpush.xpose.msra.mxu0 %v763
        %784 = vmatmul.f32.gmra.mxu0 %v760
        %v785 = vpop.f32.mrf.mxu0
        %v786 = vadd.f32 %v669, %v785
        %787 = vdwg.mxu0
        %v789 = vsel %vm671, %v573, 0
        %v792 = vsel %vm671, %v643, 0
        %v795 = vsel %vm671, %v644, 0
        %797 = vmatpush.xpose.msra.mxu0 0.0
        %798 = vmatpush.xpose.msra.mxu0 0.0
        %799 = vmatpush.xpose.msra.mxu0 0.0
        %800 = vmatpush.xpose.msra.mxu0 0.0
        %801 = vmatpush.xpose.msra.mxu0 0.0
        %802 = vmatpush.xpose.msra.mxu0 0.0
        %803 = vmatpush.xpose.msra.mxu0 0.0
        %804 = vmatpush.xpose.msra.mxu0 0.0
        %805 = vmatpush.xpose.msra.mxu0 0.0
        %806 = vmatpush.xpose.msra.mxu0 0.0
        %807 = vmatpush.xpose.msra.mxu0 0.0
        %808 = vmatpush.xpose.msra.mxu0 0.0
        %809 = vmatpush.xpose.msra.mxu0 0.0
        %810 = vmatpush.xpose.msra.mxu0 0.0
        %811 = vmatpush.xpose.msra.mxu0 %v795
        %812 = vmatpush.xpose.msra.mxu0 %v792
        %813 = vmatmul.f32.gmra.mxu0 %v789
        %v814 = vpop.f32.mrf.mxu0
        %v815 = vadd.f32 %v669, %v814
        %816 = vdwg.mxu0
        %v818 = vsel %vm671, %v593, 0
        %v821 = vsel %vm671, %v645, 0
        %v824 = vsel %vm671, %v646, 0
        %826 = vmatpush.xpose.msra.mxu0 0.0
        %827 = vmatpush.xpose.msra.mxu0 0.0
        %828 = vmatpush.xpose.msra.mxu0 0.0
        %829 = vmatpush.xpose.msra.mxu0 0.0
        %830 = vmatpush.xpose.msra.mxu0 0.0
        %831 = vmatpush.xpose.msra.mxu0 0.0
        %832 = vmatpush.xpose.msra.mxu0 0.0
        %833 = vmatpush.xpose.msra.mxu0 0.0
        %834 = vmatpush.xpose.msra.mxu0 0.0
        %835 = vmatpush.xpose.msra.mxu0 0.0
        %836 = vmatpush.xpose.msra.mxu0 0.0
        %837 = vmatpush.xpose.msra.mxu0 0.0
        %838 = vmatpush.xpose.msra.mxu0 0.0
        %839 = vmatpush.xpose.msra.mxu0 0.0
        %840 = vmatpush.xpose.msra.mxu0 %v824
        %841 = vmatpush.xpose.msra.mxu0 %v821
        %842 = vmatmul.f32.gmra.mxu0 %v818
        %v843 = vpop.f32.mrf.mxu0
        %v844 = vadd.f32 %v669, %v843
        %845 = vdwg.mxu0
        %v847 = vsel %vm671, %v613, 0
        %v850 = vsel %vm671, %v647, 0
        %v853 = vsel %vm671, %v648, 0
        %855 = vmatpush.xpose.msra.mxu0 0.0
        %856 = vmatpush.xpose.msra.mxu0 0.0
        %857 = vmatpush.xpose.msra.mxu0 0.0
        %858 = vmatpush.xpose.msra.mxu0 0.0
        %859 = vmatpush.xpose.msra.mxu0 0.0
        %860 = vmatpush.xpose.msra.mxu0 0.0
        %861 = vmatpush.xpose.msra.mxu0 0.0
        %862 = vmatpush.xpose.msra.mxu0 0.0
        %863 = vmatpush.xpose.msra.mxu0 0.0
        %864 = vmatpush.xpose.msra.mxu0 0.0
        %865 = vmatpush.xpose.msra.mxu0 0.0
        %866 = vmatpush.xpose.msra.mxu0 0.0
        %867 = vmatpush.xpose.msra.mxu0 0.0
        %868 = vmatpush.xpose.msra.mxu0 0.0
        %869 = vmatpush.xpose.msra.mxu0 %v853
        %870 = vmatpush.xpose.msra.mxu0 %v850
        %871 = vmatmul.f32.gmra.mxu0 %v847
        %v872 = vpop.f32.mrf.mxu0
        %v873 = vadd.f32 %v669, %v872
        %874 = vdwg.mxu0
        %v876 = vsel %vm671, %v633, 0
        %v879 = vsel %vm671, %v649, 0
        %v882 = vsel %vm671, %v650, 0
        %884 = vmatpush.xpose.msra.mxu0 0.0
        %885 = vmatpush.xpose.msra.mxu0 0.0
        %886 = vmatpush.xpose.msra.mxu0 0.0
        %887 = vmatpush.xpose.msra.mxu0 0.0
        %888 = vmatpush.xpose.msra.mxu0 0.0
        %889 = vmatpush.xpose.msra.mxu0 0.0
        %890 = vmatpush.xpose.msra.mxu0 0.0
        %891 = vmatpush.xpose.msra.mxu0 0.0
        %892 = vmatpush.xpose.msra.mxu0 0.0
        %893 = vmatpush.xpose.msra.mxu0 0.0
        %894 = vmatpush.xpose.msra.mxu0 0.0
        %895 = vmatpush.xpose.msra.mxu0 0.0
        %896 = vmatpush.xpose.msra.mxu0 0.0
        %897 = vmatpush.xpose.msra.mxu0 0.0
        %898 = vmatpush.xpose.msra.mxu0 %v882
        %899 = vmatpush.xpose.msra.mxu0 %v879
        %900 = vmatmul.f32.gmra.mxu0 %v876
        %v901 = vpop.f32.mrf.mxu0
        %v902 = vadd.f32 %v669, %v901
        %903 = vdwg.mxu0
        %vm904 = vcmask 130048
        %v905 = vsel %vm904, %v699, -inf
        %906 = vmax.xlane.f32.xlu0 %v905
        %v907 = vpop.xlane.xlu0 %906
        %v908 = vsel %vm904, %v728, -inf
        %909 = vmax.xlane.f32.xlu0 %v908
        %v910 = vpop.xlane.xlu0 %909
        %v911 = vsel %vm904, %v757, -inf
        %912 = vmax.xlane.f32.xlu0 %v911
        %v913 = vpop.xlane.xlu0 %912
        %v914 = vsel %vm904, %v786, -inf
        %915 = vmax.xlane.f32.xlu0 %v914
        %v916 = vpop.xlane.xlu0 %915
        %v917 = vsel %vm904, %v815, -inf
        %918 = vmax.xlane.f32.xlu0 %v917
        %v919 = vpop.xlane.xlu0 %918
        %v920 = vsel %vm904, %v844, -inf
        %921 = vmax.xlane.f32.xlu0 %v920
        %v922 = vpop.xlane.xlu0 %921
        %v923 = vsel %vm904, %v873, -inf
        %924 = vmax.xlane.f32.xlu0 %v923
        %v925 = vpop.xlane.xlu0 %924
        %v926 = vsel %vm904, %v902, -inf
        %927 = vmax.xlane.f32.xlu0 %v926
        %v928 = vpop.xlane.xlu0 %927
        %v929 = vsub.f32 %v699, %v907
        %v930 = vsub.f32 %v728, %v910
        %v931 = vsub.f32 %v757, %v913
        %v932 = vsub.f32 %v786, %v916
        %v933 = vsub.f32 %v815, %v919
        %v934 = vsub.f32 %v844, %v922
        %v935 = vsub.f32 %v873, %v925
        %v936 = vsub.f32 %v902, %v928
        %v937 = vmul.f32 %v929, 1.442695
        %v938 = vpow.pop %v937
        %v939 = vmul.f32 %v930, 1.442695
        %v940 = vpow.pop %v939
        %v941 = vmul.f32 %v931, 1.442695
        %v942 = vpow.pop %v941
        %v943 = vmul.f32 %v932, 1.442695
        %v944 = vpow.pop %v943
        %v945 = vmul.f32 %v933, 1.442695
        %v946 = vpow.pop %v945
        %v947 = vmul.f32 %v934, 1.442695
        %v948 = vpow.pop %v947
        %v949 = vmul.f32 %v935, 1.442695
        %v950 = vpow.pop %v949
        %v951 = vmul.f32 %v936, 1.442695
        %v952 = vpow.pop %v951
        %v953 = vsel %vm904, %v938, 0.0
        %954 = vadd.xlane.f32.xlu0 %v953
        %v955 = vpop.xlane.xlu0 %954
        %v956 = vsel %vm904, %v940, 0.0
        %957 = vadd.xlane.f32.xlu0 %v956
        %v958 = vpop.xlane.xlu0 %957
        %v959 = vsel %vm904, %v942, 0.0
        %960 = vadd.xlane.f32.xlu0 %v959
        %v961 = vpop.xlane.xlu0 %960
        %v962 = vsel %vm904, %v944, 0.0
        %963 = vadd.xlane.f32.xlu0 %v962
        %v964 = vpop.xlane.xlu0 %963
        %v965 = vsel %vm904, %v946, 0.0
        %966 = vadd.xlane.f32.xlu0 %v965
        %v967 = vpop.xlane.xlu0 %966
        %v968 = vsel %vm904, %v948, 0.0
        %969 = vadd.xlane.f32.xlu0 %v968
        %v970 = vpop.xlane.xlu0 %969
        %v971 = vsel %vm904, %v950, 0.0
        %972 = vadd.xlane.f32.xlu0 %v971
        %v973 = vpop.xlane.xlu0 %972
        %v974 = vsel %vm904, %v952, 0.0
        %975 = vadd.xlane.f32.xlu0 %v974
        %v976 = vpop.xlane.xlu0 %975
        %v977 = vrcp.pop %v955
        %v978 = vrcp.pop %v958
        %v979 = vrcp.pop %v961
        %v980 = vrcp.pop %v964
        %v981 = vrcp.pop %v967
        %v982 = vrcp.pop %v970
        %v983 = vrcp.pop %v973
        %v984 = vrcp.pop %v976
        %v986 = vsel %vm904, %v938, 0
        %988 = vmatpush.msra.mxu0 0.0
        %989 = vmatpush.msra.mxu0 0.0
        %990 = vmatpush.msra.mxu0 0.0
        %991 = vmatpush.msra.mxu0 0.0
        %992 = vmatpush.msra.mxu0 0.0
        %993 = vmatpush.msra.mxu0 0.0
        %994 = vmatpush.msra.mxu0 0.0
        %995 = vmatpush.msra.mxu0 0.0
        %996 = vmatpush.msra.mxu0 0.0
        %997 = vmatpush.msra.mxu0 0.0
        %998 = vmatpush.msra.mxu0 0.0
        %999 = vmatpush.msra.mxu0 0.0
        %1000 = vmatpush.msra.mxu0 0.0
        %1001 = vmatpush.msra.mxu0 0.0
        %1002 = vmatpush.msra.mxu0 %v652
        %1003 = vmatpush.msra.mxu0 %v651
        %1004 = vmatmul.f32.gmra.mxu0 %v986
        %v1005 = vpop.f32.mrf.mxu0
        %v1006 = vadd.f32 0.0, %v1005
        %1007 = vdwg.mxu0
        %v1009 = vsel %vm904, %v940, 0
        %1011 = vmatpush.msra.mxu0 0.0
        %1012 = vmatpush.msra.mxu0 0.0
        %1013 = vmatpush.msra.mxu0 0.0
        %1014 = vmatpush.msra.mxu0 0.0
        %1015 = vmatpush.msra.mxu0 0.0
        %1016 = vmatpush.msra.mxu0 0.0
        %1017 = vmatpush.msra.mxu0 0.0
        %1018 = vmatpush.msra.mxu0 0.0
        %1019 = vmatpush.msra.mxu0 0.0
        %1020 = vmatpush.msra.mxu0 0.0
        %1021 = vmatpush.msra.mxu0 0.0
        %1022 = vmatpush.msra.mxu0 0.0
        %1023 = vmatpush.msra.mxu0 0.0
        %1024 = vmatpush.msra.mxu0 0.0
        %1025 = vmatpush.msra.mxu0 %v654
        %1026 = vmatpush.msra.mxu0 %v653
        %1027 = vmatmul.f32.gmra.mxu0 %v1009
        %v1028 = vpop.f32.mrf.mxu0
        %v1029 = vadd.f32 0.0, %v1028
        %1030 = vdwg.mxu0
        %v1032 = vsel %vm904, %v942, 0
        %1034 = vmatpush.msra.mxu0 0.0
        %1035 = vmatpush.msra.mxu0 0.0
        %1036 = vmatpush.msra.mxu0 0.0
        %1037 = vmatpush.msra.mxu0 0.0
        %1038 = vmatpush.msra.mxu0 0.0
        %1039 = vmatpush.msra.mxu0 0.0
        %1040 = vmatpush.msra.mxu0 0.0
        %1041 = vmatpush.msra.mxu0 0.0
        %1042 = vmatpush.msra.mxu0 0.0
        %1043 = vmatpush.msra.mxu0 0.0
        %1044 = vmatpush.msra.mxu0 0.0
        %1045 = vmatpush.msra.mxu0 0.0
        %1046 = vmatpush.msra.mxu0 0.0
        %1047 = vmatpush.msra.mxu0 0.0
        %1048 = vmatpush.msra.mxu0 %v656
        %1049 = vmatpush.msra.mxu0 %v655
        %1050 = vmatmul.f32.gmra.mxu0 %v1032
        %v1051 = vpop.f32.mrf.mxu0
        %v1052 = vadd.f32 0.0, %v1051
        %1053 = vdwg.mxu0
        %v1055 = vsel %vm904, %v944, 0
        %1057 = vmatpush.msra.mxu0 0.0
        %1058 = vmatpush.msra.mxu0 0.0
        %1059 = vmatpush.msra.mxu0 0.0
        %1060 = vmatpush.msra.mxu0 0.0
        %1061 = vmatpush.msra.mxu0 0.0
        %1062 = vmatpush.msra.mxu0 0.0
        %1063 = vmatpush.msra.mxu0 0.0
        %1064 = vmatpush.msra.mxu0 0.0
        %1065 = vmatpush.msra.mxu0 0.0
        %1066 = vmatpush.msra.mxu0 0.0
        %1067 = vmatpush.msra.mxu0 0.0
        %1068 = vmatpush.msra.mxu0 0.0
        %1069 = vmatpush.msra.mxu0 0.0
        %1070 = vmatpush.msra.mxu0 0.0
        %1071 = vmatpush.msra.mxu0 %v658
        %1072 = vmatpush.msra.mxu0 %v657
        %1073 = vmatmul.f32.gmra.mxu0 %v1055
        %v1074 = vpop.f32.mrf.mxu0
        %v1075 = vadd.f32 0.0, %v1074
        %1076 = vdwg.mxu0
        %v1078 = vsel %vm904, %v946, 0
        %1080 = vmatpush.msra.mxu0 0.0
        %1081 = vmatpush.msra.mxu0 0.0
        %1082 = vmatpush.msra.mxu0 0.0
        %1083 = vmatpush.msra.mxu0 0.0
        %1084 = vmatpush.msra.mxu0 0.0
        %1085 = vmatpush.msra.mxu0 0.0
        %1086 = vmatpush.msra.mxu0 0.0
        %1087 = vmatpush.msra.mxu0 0.0
        %1088 = vmatpush.msra.mxu0 0.0
        %1089 = vmatpush.msra.mxu0 0.0
        %1090 = vmatpush.msra.mxu0 0.0
        %1091 = vmatpush.msra.mxu0 0.0
        %1092 = vmatpush.msra.mxu0 0.0
        %1093 = vmatpush.msra.mxu0 0.0
        %1094 = vmatpush.msra.mxu0 %v660
        %1095 = vmatpush.msra.mxu0 %v659
        %1096 = vmatmul.f32.gmra.mxu0 %v1078
        %v1097 = vpop.f32.mrf.mxu0
        %v1098 = vadd.f32 0.0, %v1097
        %1099 = vdwg.mxu0
        %v1101 = vsel %vm904, %v948, 0
        %1103 = vmatpush.msra.mxu0 0.0
        %1104 = vmatpush.msra.mxu0 0.0
        %1105 = vmatpush.msra.mxu0 0.0
        %1106 = vmatpush.msra.mxu0 0.0
        %1107 = vmatpush.msra.mxu0 0.0
        %1108 = vmatpush.msra.mxu0 0.0
        %1109 = vmatpush.msra.mxu0 0.0
        %1110 = vmatpush.msra.mxu0 0.0
        %1111 = vmatpush.msra.mxu0 0.0
        %1112 = vmatpush.msra.mxu0 0.0
        %1113 = vmatpush.msra.mxu0 0.0
        %1114 = vmatpush.msra.mxu0 0.0
        %1115 = vmatpush.msra.mxu0 0.0
        %1116 = vmatpush.msra.mxu0 0.0
        %1117 = vmatpush.msra.mxu0 %v662
        %1118 = vmatpush.msra.mxu0 %v661
        %1119 = vmatmul.f32.gmra.mxu0 %v1101
        %v1120 = vpop.f32.mrf.mxu0
        %v1121 = vadd.f32 0.0, %v1120
        %1122 = vdwg.mxu0
        %v1124 = vsel %vm904, %v950, 0
        %1126 = vmatpush.msra.mxu0 0.0
        %1127 = vmatpush.msra.mxu0 0.0
        %1128 = vmatpush.msra.mxu0 0.0
        %1129 = vmatpush.msra.mxu0 0.0
        %1130 = vmatpush.msra.mxu0 0.0
        %1131 = vmatpush.msra.mxu0 0.0
        %1132 = vmatpush.msra.mxu0 0.0
        %1133 = vmatpush.msra.mxu0 0.0
        %1134 = vmatpush.msra.mxu0 0.0
        %1135 = vmatpush.msra.mxu0 0.0
        %1136 = vmatpush.msra.mxu0 0.0
        %1137 = vmatpush.msra.mxu0 0.0
        %1138 = vmatpush.msra.mxu0 0.0
        %1139 = vmatpush.msra.mxu0 0.0
        %1140 = vmatpush.msra.mxu0 %v664
        %1141 = vmatpush.msra.mxu0 %v663
        %1142 = vmatmul.f32.gmra.mxu0 %v1124
        %v1143 = vpop.f32.mrf.mxu0
        %v1144 = vadd.f32 0.0, %v1143
        %1145 = vdwg.mxu0
        %v1147 = vsel %vm904, %v952, 0
        %1149 = vmatpush.msra.mxu0 0.0
        %1150 = vmatpush.msra.mxu0 0.0
        %1151 = vmatpush.msra.mxu0 0.0
        %1152 = vmatpush.msra.mxu0 0.0
        %1153 = vmatpush.msra.mxu0 0.0
        %1154 = vmatpush.msra.mxu0 0.0
        %1155 = vmatpush.msra.mxu0 0.0
        %1156 = vmatpush.msra.mxu0 0.0
        %1157 = vmatpush.msra.mxu0 0.0
        %1158 = vmatpush.msra.mxu0 0.0
        %1159 = vmatpush.msra.mxu0 0.0
        %1160 = vmatpush.msra.mxu0 0.0
        %1161 = vmatpush.msra.mxu0 0.0
        %1162 = vmatpush.msra.mxu0 0.0
        %1163 = vmatpush.msra.mxu0 %v666
        %1164 = vmatpush.msra.mxu0 %v665
        %1165 = vmatmul.f32.gmra.mxu0 %v1147
        %v1166 = vpop.f32.mrf.mxu0
        %v1167 = vadd.f32 0.0, %v1166
        %1168 = vdwg.mxu0
        %v1169 = vmul.f32 %v1006, %v977
        %v1170 = vmul.f32 %v1029, %v978
        %v1171 = vmul.f32 %v1052, %v979
        %v1172 = vmul.f32 %v1075, %v980
        %v1173 = vmul.f32 %v1098, %v981
        %v1174 = vmul.f32 %v1121, %v982
        %v1175 = vmul.f32 %v1144, %v983
        %v1176 = vmul.f32 %v1167, %v984
        %v1177 = vld [vmem:[%s5] sm:$0xf]
        %v1178 = vld [vmem:[%s5 + $0x4] sm:$0xf]
        %v1179 = vld [vmem:[%s5 + $0x8] sm:$0xf]
        %v1180 = vld [vmem:[%s5 + $0xc] sm:$0xf]
        %v1181 = vld [vmem:[%s5 + $0x10] sm:$0xf]
        %v1182 = vld [vmem:[%s5 + $0x14] sm:$0xf]
        %v1183 = vld [vmem:[%s5 + $0x18] sm:$0xf]
        %v1184 = vld [vmem:[%s5 + $0x1c] sm:$0xf]
        %v1186 = vsel %vm671, %v1169, 0
        %vm1188 = vcmask 1043456
        %v1190 = vsel %vm1188, %v1177, 0
        %1192 = vmatpush.msra.mxu0 0.0
        %1193 = vmatpush.msra.mxu0 0.0
        %1194 = vmatpush.msra.mxu0 0.0
        %1195 = vmatpush.msra.mxu0 0.0
        %1196 = vmatpush.msra.mxu0 0.0
        %1197 = vmatpush.msra.mxu0 0.0
        %1198 = vmatpush.msra.mxu0 0.0
        %1199 = vmatpush.msra.mxu0 0.0
        %1200 = vmatpush.msra.mxu0 0.0
        %1201 = vmatpush.msra.mxu0 0.0
        %1202 = vmatpush.msra.mxu0 0.0
        %1203 = vmatpush.msra.mxu0 0.0
        %1204 = vmatpush.msra.mxu0 0.0
        %1205 = vmatpush.msra.mxu0 0.0
        %1206 = vmatpush.msra.mxu0 0.0
        %1207 = vmatpush.msra.mxu0 %v1190
        %1208 = vmatmul.f32.gmra.mxu0 %v1186
        %v1209 = vpop.f32.mrf.mxu0
        %v1210 = vadd.f32 0.0, %v1209
        %1211 = vdwg.mxu0
        %v1213 = vsel %vm671, %v1170, 0
        %v1216 = vsel %vm1188, %v1178, 0
        %1218 = vmatpush.msra.mxu0 0.0
        %1219 = vmatpush.msra.mxu0 0.0
        %1220 = vmatpush.msra.mxu0 0.0
        %1221 = vmatpush.msra.mxu0 0.0
        %1222 = vmatpush.msra.mxu0 0.0
        %1223 = vmatpush.msra.mxu0 0.0
        %1224 = vmatpush.msra.mxu0 0.0
        %1225 = vmatpush.msra.mxu0 0.0
        %1226 = vmatpush.msra.mxu0 0.0
        %1227 = vmatpush.msra.mxu0 0.0
        %1228 = vmatpush.msra.mxu0 0.0
        %1229 = vmatpush.msra.mxu0 0.0
        %1230 = vmatpush.msra.mxu0 0.0
        %1231 = vmatpush.msra.mxu0 0.0
        %1232 = vmatpush.msra.mxu0 0.0
        %1233 = vmatpush.msra.mxu0 %v1216
        %1234 = vmatmul.f32.gmra.mxu0 %v1213
        %v1235 = vpop.f32.mrf.mxu0
        %v1236 = vadd.f32 0.0, %v1235
        %1237 = vdwg.mxu0
        %v1239 = vsel %vm671, %v1171, 0
        %v1242 = vsel %vm1188, %v1179, 0
        %1244 = vmatpush.msra.mxu0 0.0
        %1245 = vmatpush.msra.mxu0 0.0
        %1246 = vmatpush.msra.mxu0 0.0
        %1247 = vmatpush.msra.mxu0 0.0
        %1248 = vmatpush.msra.mxu0 0.0
        %1249 = vmatpush.msra.mxu0 0.0
        %1250 = vmatpush.msra.mxu0 0.0
        %1251 = vmatpush.msra.mxu0 0.0
        %1252 = vmatpush.msra.mxu0 0.0
        %1253 = vmatpush.msra.mxu0 0.0
        %1254 = vmatpush.msra.mxu0 0.0
        %1255 = vmatpush.msra.mxu0 0.0
        %1256 = vmatpush.msra.mxu0 0.0
        %1257 = vmatpush.msra.mxu0 0.0
        %1258 = vmatpush.msra.mxu0 0.0
        %1259 = vmatpush.msra.mxu0 %v1242
        %1260 = vmatmul.f32.gmra.mxu0 %v1239
        %v1261 = vpop.f32.mrf.mxu0
        %v1262 = vadd.f32 0.0, %v1261
        %1263 = vdwg.mxu0
        %v1265 = vsel %vm671, %v1172, 0
        %v1268 = vsel %vm1188, %v1180, 0
        %1270 = vmatpush.msra.mxu0 0.0
        %1271 = vmatpush.msra.mxu0 0.0
        %1272 = vmatpush.msra.mxu0 0.0
        %1273 = vmatpush.msra.mxu0 0.0
        %1274 = vmatpush.msra.mxu0 0.0
        %1275 = vmatpush.msra.mxu0 0.0
        %1276 = vmatpush.msra.mxu0 0.0
        %1277 = vmatpush.msra.mxu0 0.0
        %1278 = vmatpush.msra.mxu0 0.0
        %1279 = vmatpush.msra.mxu0 0.0
        %1280 = vmatpush.msra.mxu0 0.0
        %1281 = vmatpush.msra.mxu0 0.0
        %1282 = vmatpush.msra.mxu0 0.0
        %1283 = vmatpush.msra.mxu0 0.0
        %1284 = vmatpush.msra.mxu0 0.0
        %1285 = vmatpush.msra.mxu0 %v1268
        %1286 = vmatmul.f32.gmra.mxu0 %v1265
        %v1287 = vpop.f32.mrf.mxu0
        %v1288 = vadd.f32 0.0, %v1287
        %1289 = vdwg.mxu0
        %v1291 = vsel %vm671, %v1173, 0
        %v1294 = vsel %vm1188, %v1181, 0
        %1296 = vmatpush.msra.mxu0 0.0
        %1297 = vmatpush.msra.mxu0 0.0
        %1298 = vmatpush.msra.mxu0 0.0
        %1299 = vmatpush.msra.mxu0 0.0
        %1300 = vmatpush.msra.mxu0 0.0
        %1301 = vmatpush.msra.mxu0 0.0
        %1302 = vmatpush.msra.mxu0 0.0
        %1303 = vmatpush.msra.mxu0 0.0
        %1304 = vmatpush.msra.mxu0 0.0
        %1305 = vmatpush.msra.mxu0 0.0
        %1306 = vmatpush.msra.mxu0 0.0
        %1307 = vmatpush.msra.mxu0 0.0
        %1308 = vmatpush.msra.mxu0 0.0
        %1309 = vmatpush.msra.mxu0 0.0
        %1310 = vmatpush.msra.mxu0 0.0
        %1311 = vmatpush.msra.mxu0 %v1294
        %1312 = vmatmul.f32.gmra.mxu0 %v1291
        %v1313 = vpop.f32.mrf.mxu0
        %v1314 = vadd.f32 0.0, %v1313
        %1315 = vdwg.mxu0
        %v1317 = vsel %vm671, %v1174, 0
        %v1320 = vsel %vm1188, %v1182, 0
        %1322 = vmatpush.msra.mxu0 0.0
        %1323 = vmatpush.msra.mxu0 0.0
        %1324 = vmatpush.msra.mxu0 0.0
        %1325 = vmatpush.msra.mxu0 0.0
        %1326 = vmatpush.msra.mxu0 0.0
        %1327 = vmatpush.msra.mxu0 0.0
        %1328 = vmatpush.msra.mxu0 0.0
        %1329 = vmatpush.msra.mxu0 0.0
        %1330 = vmatpush.msra.mxu0 0.0
        %1331 = vmatpush.msra.mxu0 0.0
        %1332 = vmatpush.msra.mxu0 0.0
        %1333 = vmatpush.msra.mxu0 0.0
        %1334 = vmatpush.msra.mxu0 0.0
        %1335 = vmatpush.msra.mxu0 0.0
        %1336 = vmatpush.msra.mxu0 0.0
        %1337 = vmatpush.msra.mxu0 %v1320
        %1338 = vmatmul.f32.gmra.mxu0 %v1317
        %v1339 = vpop.f32.mrf.mxu0
        %v1340 = vadd.f32 0.0, %v1339
        %1341 = vdwg.mxu0
        %v1343 = vsel %vm671, %v1175, 0
        %v1346 = vsel %vm1188, %v1183, 0
        %1348 = vmatpush.msra.mxu0 0.0
        %1349 = vmatpush.msra.mxu0 0.0
        %1350 = vmatpush.msra.mxu0 0.0
        %1351 = vmatpush.msra.mxu0 0.0
        %1352 = vmatpush.msra.mxu0 0.0
        %1353 = vmatpush.msra.mxu0 0.0
        %1354 = vmatpush.msra.mxu0 0.0
        %1355 = vmatpush.msra.mxu0 0.0
        %1356 = vmatpush.msra.mxu0 0.0
        %1357 = vmatpush.msra.mxu0 0.0
        %1358 = vmatpush.msra.mxu0 0.0
        %1359 = vmatpush.msra.mxu0 0.0
        %1360 = vmatpush.msra.mxu0 0.0
        %1361 = vmatpush.msra.mxu0 0.0
        %1362 = vmatpush.msra.mxu0 0.0
        %1363 = vmatpush.msra.mxu0 %v1346
        %1364 = vmatmul.f32.gmra.mxu0 %v1343
        %v1365 = vpop.f32.mrf.mxu0
        %v1366 = vadd.f32 0.0, %v1365
        %1367 = vdwg.mxu0
        %v1369 = vsel %vm671, %v1176, 0
        %v1372 = vsel %vm1188, %v1184, 0
        %1374 = vmatpush.msra.mxu0 0.0
        %1375 = vmatpush.msra.mxu0 0.0
        %1376 = vmatpush.msra.mxu0 0.0
        %1377 = vmatpush.msra.mxu0 0.0
        %1378 = vmatpush.msra.mxu0 0.0
        %1379 = vmatpush.msra.mxu0 0.0
        %1380 = vmatpush.msra.mxu0 0.0
        %1381 = vmatpush.msra.mxu0 0.0
        %1382 = vmatpush.msra.mxu0 0.0
        %1383 = vmatpush.msra.mxu0 0.0
        %1384 = vmatpush.msra.mxu0 0.0
        %1385 = vmatpush.msra.mxu0 0.0
        %1386 = vmatpush.msra.mxu0 0.0
        %1387 = vmatpush.msra.mxu0 0.0
        %1388 = vmatpush.msra.mxu0 0.0
        %1389 = vmatpush.msra.mxu0 %v1372
        %1390 = vmatmul.f32.gmra.mxu0 %v1369
        %v1391 = vpop.f32.mrf.mxu0
        %v1392 = vadd.f32 0.0, %v1391
        %1393 = vdwg.mxu0
        %v1394 = vsel %vm384, %v1210, 0.0
        %v1395 = vsel %vm384, %v1236, 0.0
        %v1396 = vadd.f32 %v1394, %v1395
        %v1397 = vsel %vm384, %v1262, 0.0
        %v1398 = vadd.f32 %v1396, %v1397
        %v1399 = vsel %vm384, %v1288, 0.0
        %v1400 = vadd.f32 %v1398, %v1399
        %v1401 = vsel %vm384, %v1314, 0.0
        %v1402 = vadd.f32 %v1400, %v1401
        %v1403 = vsel %vm384, %v1340, 0.0
        %v1404 = vadd.f32 %v1402, %v1403
        %v1405 = vsel %vm384, %v1366, 0.0
        %v1406 = vadd.f32 %v1404, %v1405
        %v1407 = vsel %vm384, %v1392, 0.0
        %v1408 = vadd.f32 %v1406, %v1407
        %v1409 = vadd.f32 %v1408, %v383
        %1410 = vst.msk [vmem:[%s361] sm:$0xff] %vm384, %v1409
        %s1411 = sand.u32 %s234, 1
        %s1412 = scalar_lea.sflag [#allocation3], %s1411
        %s1413 = sand.u32 %s234, 1
        %s1414 = smul.addr %s1413, 8
        %s1415 = scalar_lea.vmem [#allocation2], %s1414
        // Predicated region
        $region53: #{tpu_custom_call.1} parent=51 // pred_check
          %p1416 = pneg %p244
        $region54: #{tpu_custom_call.1} parent=51 // pred_check_branch
          %1418 = sbr.rel (%p1416) target = $region56
        $region55: #{tpu_custom_call.1} parent=51 // pred_region
          %1420 = vsyncadd %s1412, 0
          %s1421 = smul.addr %s26, 2
          %s1422 = sadd.s32 %s27, %s1421
          %s1423 = smul.addr %s1422, 8
          %s1424 = scalar_lea.hbm %s8, %s1423
          %s1426 = sshll.u32 %s1415, 4
          %s1427 = int_to_ptr.vmem [resolvable:$true] %s1426
          %s1428 = sshll.u32 %s1424, 4
          %s1429 = int_to_ptr.hbm [resolvable:$true] %s1428
          %1431 = dma.vmem_to_hbm [thread:$0]  %s1427, 128, %s1429, %s1412
        $region56: #{tpu_custom_call.1} parent=51 // pred_fallthru
          _
      $region52: #{tpu_custom_call.1} parent=5 // pred_fallthru
        _
      %p1432 = scmp.le.s32.totalorder 2, %s17
      // Predicated region
      $region57: #{tpu_custom_call.1} parent=5 // pred_check
        %p1433 = pneg %p1432
      $region58: #{tpu_custom_call.1} parent=5 // pred_check_branch
        %1435 = sbr.rel (%p1433) target = $region60
      $region59: #{tpu_custom_call.1} parent=5 // pred_region
        %s1436 = ssub.s32 %s17, 2
        // Predicated region
        $region61: #{tpu_custom_call.1} parent=59 // pred_check
          %p1437 = pneg %p250
        $region62: #{tpu_custom_call.1} parent=59 // pred_check_branch
          %1439 = sbr.rel (%p1437) target = $region64
        $region63: #{tpu_custom_call.1} parent=59 // pred_region
          %s1440 = sand.u32 %s235, 1
          %s1441 = scalar_lea.sflag [#allocation3], %s1440
          %s1442 = sand.u32 %s235, 1
          %s1443 = smul.addr %s1442, 8
          %s1444 = scalar_lea.vmem [#allocation2], %s1443
          %1446 = dma.done %s1441, 128
        $region64: #{tpu_custom_call.1} parent=59 // pred_fallthru
          _
      $region60: #{tpu_custom_call.1} parent=5 // pred_fallthru
        _
    $region6: #{tpu_custom_call.1} parent=1 // loop_footer
      %s21 = sadd.s32 1, %s17
    $region7: #{tpu_custom_call.1} parent=1 // loop_footer_branch
      %16 = sbr.rel target = $region3
    $region8: #{tpu_custom_call.1} parent=1 // loop_exit
      _
    %1447 = vsyncpa [#allocation3], 1
    %s1448 = scalar_lea.sflag [#allocation3], 1
    %1449 = vsyncpa %s1448, 1

</llo_original>
